<compile_context>
chip_gen: v5e
topology: v5e:2x2
jax: 0.10.0
libtpu: 0.0.40
codegen_flags: <defaults>
</compile_context>

<pallas_src>
import functools

import jax
import jax.numpy as jnp
from jax.experimental import pallas as pl
from jax.experimental.pallas import tpu as pltpu


_LANE = 128        # pixels per output row (lane dimension of the blocks)
_ROW_TILE = 2048   # 128-pixel rows per grid step -> 256K pixels / ~10 MiB dbl-buffered


# ---------------------------------------------------------------------------
# Deterministic synthetic pinhole camera model (stands in for `camera_model`).
# ---------------------------------------------------------------------------
class PinholeCameraModel:
    def __init__(self, img_width, img_height, fx, fy, cx, cy):
        self._w = img_width
        self._h = img_height
        self.fx = fx
        self.fy = fy
        self.cx = cx
        self.cy = cy

    def image_size(self):
        return self._w, self._h

    def get_image_point(self, x3d, y3d, z3d):
        u2d = self.fx * x3d / z3d + self.cx
        v2d = self.fy * y3d / z3d + self.cy
        return u2d, v2d


# ---------------------------------------------------------------------------
# Pallas kernel: one (ROW_TILE x 128)-pixel tile of one batch element per step.
# ---------------------------------------------------------------------------
def _pcl_to_image_kernel(pcl_ref, out_ref, *, su, ou, sv, ov):
    # pcl_ref: (3, TR, 128) f32   channels x rows x pixels
    # out_ref: (TR, 256)    f32   per-pixel interleaved (u_norm, v_norm)
    x3d = pcl_ref[0]
    y3d = pcl_ref[1]
    z3d = jnp.maximum(pcl_ref[2], 1e-5)        # == clamp(min=1e-5)

    inv_z = 1.0 / z3d                          # exact divide (keeps 1e-5 tolerance)
    # Normalization constants folded into the projection:
    #   u_norm = ((fx*x/z + cx)/(W-1) - 0.5)*2 = su*x/z + ou   (likewise v)
    u = su * x3d * inv_z + ou
    v = sv * y3d * inv_z + ov

    tr, lanes = u.shape
    # Interleave u/v per pixel -> final (..., 2) memory layout, written directly.
    out_ref[...] = jnp.stack([u, v], axis=-1).reshape(tr, 2 * lanes)


def pointcloud_to_image(batch_pcl, camera_model, row_tile=_ROW_TILE):
    """Pallas equivalent of `_PointcloudToImage.forward`.

    batch_pcl: (B, 3, H, W) float32
    returns:   (B, H, W, 2) float32 normalized pixel coordinates
    """
    assert batch_pcl.ndim == 4, (
        "The input pointcloud has {} dimensions which is != 4".format(batch_pcl.ndim))
    assert batch_pcl.shape[1] == 3, (
        "The input pointcloud has {} channels which is != 3".format(batch_pcl.shape[1]))

    B, _, H, W = batch_pcl.shape
    img_w, img_h = camera_model.image_size()
    assert img_w > 1 and img_h > 1, "normalization undefined for 1-pixel images"

    # Folded projection + normalization constants (Python floats -> kernel consts).
    su = 2.0 * float(camera_model.fx) / (img_w - 1.0)
    ou = 2.0 * float(camera_model.cx) / (img_w - 1.0) - 1.0
    sv = 2.0 * float(camera_model.fy) / (img_h - 1.0)
    ov = 2.0 * float(camera_model.cy) / (img_h - 1.0) - 1.0

    N = H * W
    N_pad = pl.cdiv(N, _LANE) * _LANE

    pcl_flat = batch_pcl.reshape(B, 3, N).astype(jnp.float32)
    if N_pad != N:
        # Pad the flattened pixel dim to a lane multiple (padded z hits the clamp).
        pcl_flat = jnp.pad(pcl_flat, ((0, 0), (0, 0), (0, N_pad - N)))

    R = N_pad // _LANE                      # rows of 128 pixels
    TR = R if R <= row_tile else row_tile   # full dim or a multiple of 8
    pcl4 = pcl_flat.reshape(B, 3, R, _LANE)

    kernel = functools.partial(_pcl_to_image_kernel, su=su, ou=ou, sv=sv, ov=ov)

    out = pl.pallas_call(
        kernel,
        out_shape=jax.ShapeDtypeStruct((B, R, 2 * _LANE), jnp.float32),
        grid=(B, pl.cdiv(R, TR)),
        in_specs=[pl.BlockSpec((None, 3, TR, _LANE), lambda b, t: (b, 0, t, 0))],
        out_specs=pl.BlockSpec((None, TR, 2 * _LANE), lambda b, t: (b, t, 0)),
        compiler_params=pltpu.CompilerParams(
            dimension_semantics=("parallel", "parallel")),
    )(pcl4)

    # (B, R, 256) is bit-identical to (B, H*W_pad, 2): contiguous reshape only.
    out = out.reshape(B, N_pad, 2)
    if N_pad != N:
        out = out[:, :N, :]
    return out.reshape(B, H, W, 2)


# ---------------------------------------------------------------------------
# Pure-JAX reference for a quick sanity check.
# ---------------------------------------------------------------------------
def _reference(batch_pcl, camera_model):
    img_w, img_h = camera_model.image_size()
    B = batch_pcl.shape[0]
    x3d = batch_pcl[:, 0].reshape(B, -1)
    y3d = batch_pcl[:, 1].reshape(B, -1)
    z3d = jnp.maximum(batch_pcl[:, 2], 1e-5).reshape(B, -1)   # clamp(min=1e-5)
    u2d, v2d = camera_model.get_image_point(x3d, y3d, z3d)
    u2d_norm = (u2d / (img_w - 1) - 0.5) * 2
    v2d_norm = (v2d / (img_h - 1) - 0.5) * 2
    pix = jnp.stack([u2d_norm, v2d_norm], axis=2)
    return pix.reshape(B, img_h, img_w, 2)


if __name__ == "__main__":
    B, H, W = 2, 16, 16

    # Deterministic camera intrinsics (image size matches the pcl grid).
    cam = PinholeCameraModel(img_width=W, img_height=H,
                             fx=12.5, fy=11.0,
                             cx=(W - 1) / 2.0, cy=(H - 1) / 2.0)

    key = jax.random.PRNGKey(0)
    kx, ky, kz = jax.random.split(key, 3)
    x = jax.random.normal(kx, (B, 1, H, W), dtype=jnp.float32)
    y = jax.random.normal(ky, (B, 1, H, W), dtype=jnp.float32)
    # z includes values near / below zero to exercise the clamp.
    z = jax.random.uniform(kz, (B, 1, H, W), dtype=jnp.float32,
                           minval=-0.5, maxval=5.0)
    batch_pcl = jnp.concatenate([x, y, z], axis=1)  # (B, 3, H, W)

    out = pointcloud_to_image(batch_pcl, cam)
    out = jax.block_until_ready(out)

    ref = _reference(batch_pcl, cam)
    assert out.shape == (B, H, W, 2), out.shape
    assert jnp.allclose(out, ref, rtol=1e-5, atol=1e-5), "mismatch vs reference"

    print("KERNEL_OK")
</pallas_src>

<mosaic_0001>
module attributes {stable_mosaic.version = 11 : i64} {
  func.func @_pcl_to_image_kernel(%arg0: i32, %arg1: i32, %arg2: memref<1x3x2x128xf32, #tpu.memory_space<vmem>>, %arg3: memref<1x2x256xf32, #tpu.memory_space<vmem>>) attributes {dimension_semantics = [#tpu.dimension_semantics<parallel>, #tpu.dimension_semantics<parallel>], iteration_bounds = array<i64: 2, 1>, scalar_prefetch = 0 : i64, scratch_operands = 0 : i64, tpu.core_type = #tpu.core_type<tc>, window_params = [{transform_indices = @transform_0, window_bounds = array<i64: 1, 3, 2, 128>}, {transform_indices = @transform_1, window_bounds = array<i64: 1, 2, 256>}]} {
    %c0 = arith.constant 0 : index
    %c0_0 = arith.constant 0 : index
    %c0_1 = arith.constant 0 : index
    %c0_2 = arith.constant 0 : index
    %0 = vector.load %arg2[%c0, %c0_0, %c0_1, %c0_2] : memref<1x3x2x128xf32, #tpu.memory_space<vmem>>, vector<1x1x2x128xf32>
    %1 = vector.shape_cast %0 : vector<1x1x2x128xf32> to vector<2x128xf32>
    %c0_3 = arith.constant 0 : index
    %c1 = arith.constant 1 : index
    %c0_4 = arith.constant 0 : index
    %c0_5 = arith.constant 0 : index
    %2 = vector.load %arg2[%c0_3, %c1, %c0_4, %c0_5] : memref<1x3x2x128xf32, #tpu.memory_space<vmem>>, vector<1x1x2x128xf32>
    %3 = vector.shape_cast %2 : vector<1x1x2x128xf32> to vector<2x128xf32>
    %c0_6 = arith.constant 0 : index
    %c2 = arith.constant 2 : index
    %c0_7 = arith.constant 0 : index
    %c0_8 = arith.constant 0 : index
    %4 = vector.load %arg2[%c0_6, %c2, %c0_7, %c0_8] : memref<1x3x2x128xf32, #tpu.memory_space<vmem>>, vector<1x1x2x128xf32>
    %5 = vector.shape_cast %4 : vector<1x1x2x128xf32> to vector<2x128xf32>
    %cst = arith.constant 9.99999974E-6 : f32
    %6 = vector.broadcast %cst : f32 to vector<2x128xf32>
    %7 = arith.maximumf %5, %6 : vector<2x128xf32>
    %cst_9 = arith.constant 1.000000e+00 : f32
    %8 = vector.broadcast %cst_9 : f32 to vector<2x128xf32>
    %9 = arith.divf %8, %7 : vector<2x128xf32>
    %cst_10 = arith.constant 1.66666663 : f32
    %10 = vector.broadcast %cst_10 : f32 to vector<2x128xf32>
    %11 = arith.mulf %10, %1 : vector<2x128xf32>
    %12 = arith.mulf %11, %9 : vector<2x128xf32>
    %cst_11 = arith.constant 0.000000e+00 : f32
    %13 = vector.broadcast %cst_11 : f32 to vector<2x128xf32>
    %14 = arith.addf %12, %13 : vector<2x128xf32>
    %cst_12 = arith.constant 1.4666667 : f32
    %15 = vector.broadcast %cst_12 : f32 to vector<2x128xf32>
    %16 = arith.mulf %15, %3 : vector<2x128xf32>
    %17 = arith.mulf %16, %9 : vector<2x128xf32>
    %cst_13 = arith.constant 0.000000e+00 : f32
    %18 = vector.broadcast %cst_13 : f32 to vector<2x128xf32>
    %19 = arith.addf %17, %18 : vector<2x128xf32>
    %20 = vector.shape_cast %14 : vector<2x128xf32> to vector<2x128x1xf32>
    %21 = vector.shape_cast %19 : vector<2x128xf32> to vector<2x128x1xf32>
    %22 = tpu.concatenate %20, %21 in 2 : vector<2x128x1xf32>, vector<2x128x1xf32> -> vector<2x128x2xf32>
    %23 = vector.shape_cast %22 : vector<2x128x2xf32> to vector<2x256xf32>
    %c0_14 = arith.constant 0 : index
    %c0_15 = arith.constant 0 : index
    %c0_16 = arith.constant 0 : index
    %24 = vector.load %arg3[%c0_14, %c0_15, %c0_16] : memref<1x2x256xf32, #tpu.memory_space<vmem>>, vector<1x2x256xf32>
    %25 = vector.shape_cast %24 : vector<1x2x256xf32> to vector<2x256xf32>
    %26 = vector.shape_cast %23 : vector<2x256xf32> to vector<1x2x256xf32>
    tpu.vector_store %arg3[%c0_14, %c0_15, %c0_16], %26 {strides = array<i32>} : memref<1x2x256xf32, #tpu.memory_space<vmem>>, vector<1x2x256xf32>,
    return
  }
  func.func @transform_0(%arg0: i32, %arg1: i32) -> (i32, i32, i32, i32) {
    %c0_i32 = arith.constant 0 : i32
    %c0_i32_0 = arith.constant 0 : i32
    %c0_i32_1 = arith.constant 0 : i32
    return %arg0, %c0_i32, %arg1, %c0_i32_0 : i32, i32, i32, i32
  }
  func.func @transform_1(%arg0: i32, %arg1: i32) -> (i32, i32, i32) {
    %c0_i32 = arith.constant 0 : i32
    %c0_i32_0 = arith.constant 0 : i32
    return %arg0, %arg1, %c0_i32 : i32, i32, i32
  }
}

</mosaic_0001>

<llo_original>
// kernel: tpu_custom_call.1
$region0: #{tpu_custom_call.1}
  #allocation0 [shape = 'u32[]', space=smem, size = 0x4, offset = 0x4, fixed_abs, tag = 'smem constant byte address 0x4 - core index']
  #allocation1 [shape = 'u32[72,128]{1,0:T(1,128)}', space=vmem, size = 0x9000, scoped, tag = 'internal scratch']
  %s0 = inlined_call_operand.hbm [shape: f32[2,3,2,128], index: 0, kind: input, shape index: {}]
  %s1 = inlined_call_operand.hbm [shape: f32[2,2,256], index: 1, kind: output, shape index: {}]
  %s2 = sld [smem:[#allocation0]]
  $region41: #{tpu_custom_call.1} parent=0
    _
  %s4 = ssub.s32 1, %s2
  %s5 = scalar_select 0, %s4, %s2
  $region1: #{tpu_custom_call.1} parent=0
    #allocation2 [shape = 'u8[6144]{0}', space=vmem, size = 0x1800, scoped, tag = 'input window, operand 0']
    #allocation3 [shape = 's32[2]{0}', space=sflag, size = 0x8, scoped, tag = 'scoped memory for tpu_custom_call.1']
    #allocation4 [shape = 's32[2]{0}', space=sflag, size = 0x8, scoped, tag = 'scoped memory for tpu_custom_call.1']
    #allocation5 [shape = 'u8[4096]{0}', space=vmem, size = 0x1000, scoped, tag = 'output window, operand 0']
    %6 = vsyncpa [#allocation3], 0
    %s7 = scalar_lea.sflag [#allocation3], 1
    %8 = vsyncpa %s7, 0
    %9 = vsyncpa [#allocation4], 0
    %s10 = scalar_lea.sflag [#allocation4], 1
    %11 = vsyncpa %s10, 0
    loop: start=0, step=1, limit=4
    $region2: #{tpu_custom_call.1} parent=1 // loop_pre_header
      _
    $region3: #{tpu_custom_call.1} parent=1 // loop_header
      %s13 = sphi 0, %s17
      %p14 = scmp.ge.s32.totalorder %s13, 4
      %s20 = sphi 0, %s32
      %s21 = sphi 0, %s28
      %s22 = sphi 0, %s20
      %s23 = sphi 0, %s21
      %s24 = sphi 0, %s22
      %s25 = sphi 0, %s23
      %s37 = sphi 0, %s39
      %s40 = sphi 0, %s37
      %s41 = sphi 0, %s40
      %s57 = sphi 0, %s41
      %s65 = sphi 0, %s67
      %s68 = sphi 0, %s65
      %s69 = sphi 0, %s68
      %s85 = sphi 0, %s69
    $region4: #{tpu_custom_call.1} parent=1 // loop_header_branch
      %16 = sbr.rel (%p14) target = $region8
    $region5: #{tpu_custom_call.1} parent=1 // loop_body
      %s18 = ssub.s32 %s13, 1
      %s19 = ssub.s32 %s13, 2
      %s26 = sadd.s32 1, %s21
      %p27 = scmp.ge.s32.totalorder %s26, 1
      %s28 = scalar_select %p27, 0, %s26
      %s29 = sadd.s32 1, %s20
      %s30 = scalar_select %p27, %s29, %s20
      %p31 = scmp.ge.s32.totalorder %s30, 2
      %s32 = scalar_select %p31, 0, %s30
      %s33 = ssub.s32 %s20, %s32
      %s34 = ssub.s32 %s21, %s28
      %s35 = sor.u32 %s33, %s34
      %p36 = scmp.eq.s32.totalorder %s35, 0
      %s38 = sadd.s32 %s37, 1
      %s39 = scalar_select %p36, %s37, %s38
      %p42 = pneg %p36
      %p43 = scmp.eq.s32.totalorder %s13, 1
      %p44 = por %p42, %p43
      %p45 = scmp.ne.s32.totalorder %s37, %s40
      %p46 = scmp.eq.s32.totalorder %s13, 0
      %p47 = por %p45, %p46
      %p48 = scmp.ne.s32.totalorder %s37, %s40
      %p49 = scmp.eq.s32.totalorder %s18, 1
      %p50 = por %p48, %p49
      %p51 = scmp.ne.s32.totalorder %s40, %s41
      %p52 = scmp.eq.s32.totalorder %s18, 0
      %p53 = por %p51, %p52
      %p54 = scmp.ne.s32.totalorder %s40, %s41
      %p55 = scmp.eq.s32.totalorder %s19, 1
      %p56 = por %p54, %p55
      %p58 = scmp.ne.s32.totalorder %s41, %s57
      %p59 = scmp.eq.s32.totalorder %s19, 0
      %p60 = por %p58, %p59
      %s61 = ssub.s32 %s20, %s32
      %s62 = ssub.s32 %s21, %s28
      %s63 = sor.u32 %s61, %s62
      %p64 = scmp.eq.s32.totalorder %s63, 0
      %s66 = sadd.s32 %s65, 1
      %s67 = scalar_select %p64, %s65, %s66
      %p70 = pneg %p64
      %p71 = scmp.eq.s32.totalorder %s13, 1
      %p72 = por %p70, %p71
      %p73 = scmp.ne.s32.totalorder %s65, %s68
      %p74 = scmp.eq.s32.totalorder %s13, 0
      %p75 = por %p73, %p74
      %p76 = scmp.ne.s32.totalorder %s65, %s68
      %p77 = scmp.eq.s32.totalorder %s18, 1
      %p78 = por %p76, %p77
      %p79 = scmp.ne.s32.totalorder %s68, %s69
      %p80 = scmp.eq.s32.totalorder %s18, 0
      %p81 = por %p79, %p80
      %p82 = scmp.ne.s32.totalorder %s68, %s69
      %p83 = scmp.eq.s32.totalorder %s19, 1
      %p84 = por %p82, %p83
      %p86 = scmp.ne.s32.totalorder %s69, %s85
      %p87 = scmp.eq.s32.totalorder %s19, 0
      %p88 = por %p86, %p87
      %p89 = scmp.le.s32.totalorder 1, %s13
      %p90 = scmp.lt.s32.totalorder %s13, 3
      %p91 = pnand %p89, %p90
      %p92 = pneg %p91
      // Predicated region
      $region9: #{tpu_custom_call.1} parent=5 // pred_check
        _
      $region10: #{tpu_custom_call.1} parent=5 // pred_check_branch
        %94 = sbr.rel (%p91) target = $region12
      $region11: #{tpu_custom_call.1} parent=5 // pred_region
        %s95 = ssub.s32 %s13, 1
      $region12: #{tpu_custom_call.1} parent=5 // pred_fallthru
        _
      %p96 = scmp.lt.s32.totalorder %s13, 2
      // Predicated region
      $region13: #{tpu_custom_call.1} parent=5 // pred_check
        %p97 = pneg %p96
      $region14: #{tpu_custom_call.1} parent=5 // pred_check_branch
        %99 = sbr.rel (%p97) target = $region16
      $region15: #{tpu_custom_call.1} parent=5 // pred_region
        // Predicated region
        $region17: #{tpu_custom_call.1} parent=15 // pred_check
          %p100 = pneg %p47
        $region18: #{tpu_custom_call.1} parent=15 // pred_check_branch
          %102 = sbr.rel (%p100) target = $region20
        $region19: #{tpu_custom_call.1} parent=15 // pred_region
          %s103 = sand.u32 %s37, 1
          %s104 = scalar_lea.sflag [#allocation3], %s103
          %s105 = sand.u32 %s37, 1
          %s106 = smul.addr %s105, 6
          %s107 = scalar_lea.vmem [#allocation2], %s106
          %109 = vsyncadd %s104, 0
          %s110 = smul.addr %s20, 3
          %s111 = sadd.s32 %s21, %s110
          %s112 = smul.addr %s111, 2
          %s113 = scalar_lea.hbm %s0, %s112
          %s114 = sshll.u32 %s113, 4
          %s115 = int_to_ptr.hbm [resolvable:$true] %s114
          %s116 = sshll.u32 %s107, 4
          %s117 = int_to_ptr.vmem [resolvable:$true] %s116
          %122 = dma.hbm_to_vmem [thread:$0]  %s115, 96, %s117, %s104, 32, 32, 2
        $region20: #{tpu_custom_call.1} parent=15 // pred_fallthru
          _
      $region16: #{tpu_custom_call.1} parent=5 // pred_fallthru
        _
      %p123 = scmp.le.s32.totalorder 1, %s13
      %p124 = scmp.lt.s32.totalorder %s13, 3
      %p125 = pnand %p123, %p124
      %p126 = pneg %p125
      // Predicated region
      $region21: #{tpu_custom_call.1} parent=5 // pred_check
        _
      $region22: #{tpu_custom_call.1} parent=5 // pred_check_branch
        %128 = sbr.rel (%p125) target = $region24
      $region23: #{tpu_custom_call.1} parent=5 // pred_region
        %s129 = ssub.s32 %s13, 1
        %s130 = sand.u32 %s40, 1
        %s131 = scalar_lea.sflag [#allocation3], %s130
        %s132 = sand.u32 %s40, 1
        %s133 = smul.addr %s132, 6
        %s134 = scalar_lea.vmem [#allocation2], %s133
        // Predicated region
        $region25: #{tpu_custom_call.1} parent=23 // pred_check
          %p135 = pneg %p53
        $region26: #{tpu_custom_call.1} parent=23 // pred_check_branch
          %137 = sbr.rel (%p135) target = $region28
        $region27: #{tpu_custom_call.1} parent=23 // pred_region
          %139 = dma.done %s131, 96
        $region28: #{tpu_custom_call.1} parent=23 // pred_fallthru
          _
        %s140 = sand.u32 %s40, 1
        %s141 = scalar_lea.sflag [#allocation3], %s140
        %s142 = sand.u32 %s40, 1
        %s143 = smul.addr %s142, 6
        %s144 = scalar_lea.vmem [#allocation2], %s143
        %p145 = pneg %p53
        %p146 = pneg %p50
        %p147 = pneg %p81
        %p148 = pneg %p78
        %s149 = sand.u32 %s68, 1
        %s150 = scalar_lea.sflag [#allocation4], %s149
        %s151 = sand.u32 %s68, 1
        %s152 = smul.addr %s151, 4
        %s153 = scalar_lea.vmem [#allocation5], %s152
        %v154 = vld [vmem:[%s134] sm:$0x3]
        %s155 = scalar_lea.vmem %s134, 2 [#allocation2]
        %v156 = vld [vmem:[%s155] sm:$0x3]
        %s157 = scalar_lea.vmem %s134, 4 [#allocation2]
        %v158 = vld [vmem:[%s157] sm:$0x3]
        %v159 = vmax.f32 %v158, 1e-05
        %v160 = vrcp.pop %v159
        %v161 = vmul.f32 %v159, %v160
        %v162 = vsub.f32 1.0, %v161
        %v163 = vmul.f32 %v160, %v162
        %v164 = vadd.f32 %v160, %v163
        %vm165 = vweird.f32 %v159
        %vm166 = vweird.f32 %v160
        %vm167 = vmor %vm165, %vm166
        %v168 = vsel %vm167, %v160, %v164
        %v169 = vand.u32 2147483647, %v159
        %vm170 = vcmp.eq.f32.partialorder %v169, 8.507059e+37
        %v171 = vand.u32 %v159, 2147483648
        %v172 = vor.u32 1.1754944e-38, %v171
        %v173 = vsel %vm170, %v172, %v168
        %v174 = vmul.f32 1.0, %v173
        %v175 = vmul.f32 %v154, 1.6666666
        %v176 = vmul.f32 %v175, %v174
        %v177 = vadd.f32 %v176, 0.0
        %v178 = vmul.f32 %v156, 1.4666667
        %v179 = vmul.f32 %v178, %v174
        %v180 = vadd.f32 %v179, 0.0
        %v181 = vperm.slane %v177, 0
        %v182 = vlaneseq
        %v183 = vshrl.u32 %v182, 7
        %185 = vset.pattern.permute.xlu0 %v183
        %186 = vperm.xlu0 %185, %v181
        %v187 = vpop.permute.xlu0 %186
        %v188 = vlaneseq
        %v189 = vshrl.u32 %v188, 7
        %v190 = vadd.s32 %v189, 8
        %191 = vset.pattern.permute.xlu0 %v190
        %192 = vperm.xlu0 %191, %v181
        %v193 = vpop.permute.xlu0 %192
        %v194 = vlaneseq
        %v195 = vshrl.u32 %v194, 7
        %v196 = vadd.s32 %v195, 16
        %197 = vset.pattern.permute.xlu0 %v196
        %198 = vperm.xlu0 %197, %v181
        %v199 = vpop.permute.xlu0 %198
        %v200 = vlaneseq
        %v201 = vshrl.u32 %v200, 7
        %v202 = vadd.s32 %v201, 24
        %203 = vset.pattern.permute.xlu0 %v202
        %204 = vperm.xlu0 %203, %v181
        %v205 = vpop.permute.xlu0 %204
        %v206 = vlaneseq
        %v207 = vshrl.u32 %v206, 7
        %v208 = vadd.s32 %v207, 32
        %209 = vset.pattern.permute.xlu0 %v208
        %210 = vperm.xlu0 %209, %v181
        %v211 = vpop.permute.xlu0 %210
        %v212 = vlaneseq
        %v213 = vshrl.u32 %v212, 7
        %v214 = vadd.s32 %v213, 40
        %215 = vset.pattern.permute.xlu0 %v214
        %216 = vperm.xlu0 %215, %v181
        %v217 = vpop.permute.xlu0 %216
        %v218 = vlaneseq
        %v219 = vshrl.u32 %v218, 7
        %v220 = vadd.s32 %v219, 48
        %221 = vset.pattern.permute.xlu0 %v220
        %222 = vperm.xlu0 %221, %v181
        %v223 = vpop.permute.xlu0 %222
        %v224 = vlaneseq
        %v225 = vshrl.u32 %v224, 7
        %v226 = vadd.s32 %v225, 56
        %227 = vset.pattern.permute.xlu0 %v226
        %228 = vperm.xlu0 %227, %v181
        %v229 = vpop.permute.xlu0 %228
        %v230 = vlaneseq
        %v231 = vshrl.u32 %v230, 7
        %v232 = vadd.s32 %v231, 64
        %233 = vset.pattern.permute.xlu0 %v232
        %234 = vperm.xlu0 %233, %v181
        %v235 = vpop.permute.xlu0 %234
        %v236 = vlaneseq
        %v237 = vshrl.u32 %v236, 7
        %v238 = vadd.s32 %v237, 72
        %239 = vset.pattern.permute.xlu0 %v238
        %240 = vperm.xlu0 %239, %v181
        %v241 = vpop.permute.xlu0 %240
        %v242 = vlaneseq
        %v243 = vshrl.u32 %v242, 7
        %v244 = vadd.s32 %v243, 80
        %245 = vset.pattern.permute.xlu0 %v244
        %246 = vperm.xlu0 %245, %v181
        %v247 = vpop.permute.xlu0 %246
        %v248 = vlaneseq
        %v249 = vshrl.u32 %v248, 7
        %v250 = vadd.s32 %v249, 88
        %251 = vset.pattern.permute.xlu0 %v250
        %252 = vperm.xlu0 %251, %v181
        %v253 = vpop.permute.xlu0 %252
        %v254 = vlaneseq
        %v255 = vshrl.u32 %v254, 7
        %v256 = vadd.s32 %v255, 96
        %257 = vset.pattern.permute.xlu0 %v256
        %258 = vperm.xlu0 %257, %v181
        %v259 = vpop.permute.xlu0 %258
        %v260 = vlaneseq
        %v261 = vshrl.u32 %v260, 7
        %v262 = vadd.s32 %v261, 104
        %263 = vset.pattern.permute.xlu0 %v262
        %264 = vperm.xlu0 %263, %v181
        %v265 = vpop.permute.xlu0 %264
        %v266 = vlaneseq
        %v267 = vshrl.u32 %v266, 7
        %v268 = vadd.s32 %v267, 112
        %269 = vset.pattern.permute.xlu0 %v268
        %270 = vperm.xlu0 %269, %v181
        %v271 = vpop.permute.xlu0 %270
        %v272 = vlaneseq
        %v273 = vshrl.u32 %v272, 7
        %v274 = vadd.s32 %v273, 120
        %275 = vset.pattern.permute.xlu0 %v274
        %276 = vperm.xlu0 %275, %v181
        %v277 = vpop.permute.xlu0 %276
        %v278 = vperm.slane %v177, 1
        %v279 = vlaneseq
        %v280 = vshrl.u32 %v279, 7
        %282 = vset.pattern.permute.xlu0 %v280
        %283 = vperm.xlu0 %282, %v278
        %v284 = vpop.permute.xlu0 %283
        %v285 = vlaneseq
        %v286 = vshrl.u32 %v285, 7
        %v287 = vadd.s32 %v286, 8
        %288 = vset.pattern.permute.xlu0 %v287
        %289 = vperm.xlu0 %288, %v278
        %v290 = vpop.permute.xlu0 %289
        %v291 = vlaneseq
        %v292 = vshrl.u32 %v291, 7
        %v293 = vadd.s32 %v292, 16
        %294 = vset.pattern.permute.xlu0 %v293
        %295 = vperm.xlu0 %294, %v278
        %v296 = vpop.permute.xlu0 %295
        %v297 = vlaneseq
        %v298 = vshrl.u32 %v297, 7
        %v299 = vadd.s32 %v298, 24
        %300 = vset.pattern.permute.xlu0 %v299
        %301 = vperm.xlu0 %300, %v278
        %v302 = vpop.permute.xlu0 %301
        %v303 = vlaneseq
        %v304 = vshrl.u32 %v303, 7
        %v305 = vadd.s32 %v304, 32
        %306 = vset.pattern.permute.xlu0 %v305
        %307 = vperm.xlu0 %306, %v278
        %v308 = vpop.permute.xlu0 %307
        %v309 = vlaneseq
        %v310 = vshrl.u32 %v309, 7
        %v311 = vadd.s32 %v310, 40
        %312 = vset.pattern.permute.xlu0 %v311
        %313 = vperm.xlu0 %312, %v278
        %v314 = vpop.permute.xlu0 %313
        %v315 = vlaneseq
        %v316 = vshrl.u32 %v315, 7
        %v317 = vadd.s32 %v316, 48
        %318 = vset.pattern.permute.xlu0 %v317
        %319 = vperm.xlu0 %318, %v278
        %v320 = vpop.permute.xlu0 %319
        %v321 = vlaneseq
        %v322 = vshrl.u32 %v321, 7
        %v323 = vadd.s32 %v322, 56
        %324 = vset.pattern.permute.xlu0 %v323
        %325 = vperm.xlu0 %324, %v278
        %v326 = vpop.permute.xlu0 %325
        %v327 = vlaneseq
        %v328 = vshrl.u32 %v327, 7
        %v329 = vadd.s32 %v328, 64
        %330 = vset.pattern.permute.xlu0 %v329
        %331 = vperm.xlu0 %330, %v278
        %v332 = vpop.permute.xlu0 %331
        %v333 = vlaneseq
        %v334 = vshrl.u32 %v333, 7
        %v335 = vadd.s32 %v334, 72
        %336 = vset.pattern.permute.xlu0 %v335
        %337 = vperm.xlu0 %336, %v278
        %v338 = vpop.permute.xlu0 %337
        %v339 = vlaneseq
        %v340 = vshrl.u32 %v339, 7
        %v341 = vadd.s32 %v340, 80
        %342 = vset.pattern.permute.xlu0 %v341
        %343 = vperm.xlu0 %342, %v278
        %v344 = vpop.permute.xlu0 %343
        %v345 = vlaneseq
        %v346 = vshrl.u32 %v345, 7
        %v347 = vadd.s32 %v346, 88
        %348 = vset.pattern.permute.xlu0 %v347
        %349 = vperm.xlu0 %348, %v278
        %v350 = vpop.permute.xlu0 %349
        %v351 = vlaneseq
        %v352 = vshrl.u32 %v351, 7
        %v353 = vadd.s32 %v352, 96
        %354 = vset.pattern.permute.xlu0 %v353
        %355 = vperm.xlu0 %354, %v278
        %v356 = vpop.permute.xlu0 %355
        %v357 = vlaneseq
        %v358 = vshrl.u32 %v357, 7
        %v359 = vadd.s32 %v358, 104
        %360 = vset.pattern.permute.xlu0 %v359
        %361 = vperm.xlu0 %360, %v278
        %v362 = vpop.permute.xlu0 %361
        %v363 = vlaneseq
        %v364 = vshrl.u32 %v363, 7
        %v365 = vadd.s32 %v364, 112
        %366 = vset.pattern.permute.xlu0 %v365
        %367 = vperm.xlu0 %366, %v278
        %v368 = vpop.permute.xlu0 %367
        %v369 = vlaneseq
        %v370 = vshrl.u32 %v369, 7
        %v371 = vadd.s32 %v370, 120
        %372 = vset.pattern.permute.xlu0 %v371
        %373 = vperm.xlu0 %372, %v278
        %v374 = vpop.permute.xlu0 %373
        %v375 = vperm.slane %v180, 0
        %v376 = vlaneseq
        %v377 = vshrl.u32 %v376, 7
        %379 = vset.pattern.permute.xlu0 %v377
        %380 = vperm.xlu0 %379, %v375
        %v381 = vpop.permute.xlu0 %380
        %v382 = vlaneseq
        %v383 = vshrl.u32 %v382, 7
        %v384 = vadd.s32 %v383, 8
        %385 = vset.pattern.permute.xlu0 %v384
        %386 = vperm.xlu0 %385, %v375
        %v387 = vpop.permute.xlu0 %386
        %v388 = vlaneseq
        %v389 = vshrl.u32 %v388, 7
        %v390 = vadd.s32 %v389, 16
        %391 = vset.pattern.permute.xlu0 %v390
        %392 = vperm.xlu0 %391, %v375
        %v393 = vpop.permute.xlu0 %392
        %v394 = vlaneseq
        %v395 = vshrl.u32 %v394, 7
        %v396 = vadd.s32 %v395, 24
        %397 = vset.pattern.permute.xlu0 %v396
        %398 = vperm.xlu0 %397, %v375
        %v399 = vpop.permute.xlu0 %398
        %v400 = vlaneseq
        %v401 = vshrl.u32 %v400, 7
        %v402 = vadd.s32 %v401, 32
        %403 = vset.pattern.permute.xlu0 %v402
        %404 = vperm.xlu0 %403, %v375
        %v405 = vpop.permute.xlu0 %404
        %v406 = vlaneseq
        %v407 = vshrl.u32 %v406, 7
        %v408 = vadd.s32 %v407, 40
        %409 = vset.pattern.permute.xlu0 %v408
        %410 = vperm.xlu0 %409, %v375
        %v411 = vpop.permute.xlu0 %410
        %v412 = vlaneseq
        %v413 = vshrl.u32 %v412, 7
        %v414 = vadd.s32 %v413, 48
        %415 = vset.pattern.permute.xlu0 %v414
        %416 = vperm.xlu0 %415, %v375
        %v417 = vpop.permute.xlu0 %416
        %v418 = vlaneseq
        %v419 = vshrl.u32 %v418, 7
        %v420 = vadd.s32 %v419, 56
        %421 = vset.pattern.permute.xlu0 %v420
        %422 = vperm.xlu0 %421, %v375
        %v423 = vpop.permute.xlu0 %422
        %v424 = vlaneseq
        %v425 = vshrl.u32 %v424, 7
        %v426 = vadd.s32 %v425, 64
        %427 = vset.pattern.permute.xlu0 %v426
        %428 = vperm.xlu0 %427, %v375
        %v429 = vpop.permute.xlu0 %428
        %v430 = vlaneseq
        %v431 = vshrl.u32 %v430, 7
        %v432 = vadd.s32 %v431, 72
        %433 = vset.pattern.permute.xlu0 %v432
        %434 = vperm.xlu0 %433, %v375
        %v435 = vpop.permute.xlu0 %434
        %v436 = vlaneseq
        %v437 = vshrl.u32 %v436, 7
        %v438 = vadd.s32 %v437, 80
        %439 = vset.pattern.permute.xlu0 %v438
        %440 = vperm.xlu0 %439, %v375
        %v441 = vpop.permute.xlu0 %440
        %v442 = vlaneseq
        %v443 = vshrl.u32 %v442, 7
        %v444 = vadd.s32 %v443, 88
        %445 = vset.pattern.permute.xlu0 %v444
        %446 = vperm.xlu0 %445, %v375
        %v447 = vpop.permute.xlu0 %446
        %v448 = vlaneseq
        %v449 = vshrl.u32 %v448, 7
        %v450 = vadd.s32 %v449, 96
        %451 = vset.pattern.permute.xlu0 %v450
        %452 = vperm.xlu0 %451, %v375
        %v453 = vpop.permute.xlu0 %452
        %v454 = vlaneseq
        %v455 = vshrl.u32 %v454, 7
        %v456 = vadd.s32 %v455, 104
        %457 = vset.pattern.permute.xlu0 %v456
        %458 = vperm.xlu0 %457, %v375
        %v459 = vpop.permute.xlu0 %458
        %v460 = vlaneseq
        %v461 = vshrl.u32 %v460, 7
        %v462 = vadd.s32 %v461, 112
        %463 = vset.pattern.permute.xlu0 %v462
        %464 = vperm.xlu0 %463, %v375
        %v465 = vpop.permute.xlu0 %464
        %v466 = vlaneseq
        %v467 = vshrl.u32 %v466, 7
        %v468 = vadd.s32 %v467, 120
        %469 = vset.pattern.permute.xlu0 %v468
        %470 = vperm.xlu0 %469, %v375
        %v471 = vpop.permute.xlu0 %470
        %v472 = vperm.slane %v180, 1
        %v473 = vlaneseq
        %v474 = vshrl.u32 %v473, 7
        %476 = vset.pattern.permute.xlu0 %v474
        %477 = vperm.xlu0 %476, %v472
        %v478 = vpop.permute.xlu0 %477
        %v479 = vlaneseq
        %v480 = vshrl.u32 %v479, 7
        %v481 = vadd.s32 %v480, 8
        %482 = vset.pattern.permute.xlu0 %v481
        %483 = vperm.xlu0 %482, %v472
        %v484 = vpop.permute.xlu0 %483
        %v485 = vlaneseq
        %v486 = vshrl.u32 %v485, 7
        %v487 = vadd.s32 %v486, 16
        %488 = vset.pattern.permute.xlu0 %v487
        %489 = vperm.xlu0 %488, %v472
        %v490 = vpop.permute.xlu0 %489
        %v491 = vlaneseq
        %v492 = vshrl.u32 %v491, 7
        %v493 = vadd.s32 %v492, 24
        %494 = vset.pattern.permute.xlu0 %v493
        %495 = vperm.xlu0 %494, %v472
        %v496 = vpop.permute.xlu0 %495
        %v497 = vlaneseq
        %v498 = vshrl.u32 %v497, 7
        %v499 = vadd.s32 %v498, 32
        %500 = vset.pattern.permute.xlu0 %v499
        %501 = vperm.xlu0 %500, %v472
        %v502 = vpop.permute.xlu0 %501
        %v503 = vlaneseq
        %v504 = vshrl.u32 %v503, 7
        %v505 = vadd.s32 %v504, 40
        %506 = vset.pattern.permute.xlu0 %v505
        %507 = vperm.xlu0 %506, %v472
        %v508 = vpop.permute.xlu0 %507
        %v509 = vlaneseq
        %v510 = vshrl.u32 %v509, 7
        %v511 = vadd.s32 %v510, 48
        %512 = vset.pattern.permute.xlu0 %v511
        %513 = vperm.xlu0 %512, %v472
        %v514 = vpop.permute.xlu0 %513
        %v515 = vlaneseq
        %v516 = vshrl.u32 %v515, 7
        %v517 = vadd.s32 %v516, 56
        %518 = vset.pattern.permute.xlu0 %v517
        %519 = vperm.xlu0 %518, %v472
        %v520 = vpop.permute.xlu0 %519
        %v521 = vlaneseq
        %v522 = vshrl.u32 %v521, 7
        %v523 = vadd.s32 %v522, 64
        %524 = vset.pattern.permute.xlu0 %v523
        %525 = vperm.xlu0 %524, %v472
        %v526 = vpop.permute.xlu0 %525
        %v527 = vlaneseq
        %v528 = vshrl.u32 %v527, 7
        %v529 = vadd.s32 %v528, 72
        %530 = vset.pattern.permute.xlu0 %v529
        %531 = vperm.xlu0 %530, %v472
        %v532 = vpop.permute.xlu0 %531
        %v533 = vlaneseq
        %v534 = vshrl.u32 %v533, 7
        %v535 = vadd.s32 %v534, 80
        %536 = vset.pattern.permute.xlu0 %v535
        %537 = vperm.xlu0 %536, %v472
        %v538 = vpop.permute.xlu0 %537
        %v539 = vlaneseq
        %v540 = vshrl.u32 %v539, 7
        %v541 = vadd.s32 %v540, 88
        %542 = vset.pattern.permute.xlu0 %v541
        %543 = vperm.xlu0 %542, %v472
        %v544 = vpop.permute.xlu0 %543
        %v545 = vlaneseq
        %v546 = vshrl.u32 %v545, 7
        %v547 = vadd.s32 %v546, 96
        %548 = vset.pattern.permute.xlu0 %v547
        %549 = vperm.xlu0 %548, %v472
        %v550 = vpop.permute.xlu0 %549
        %v551 = vlaneseq
        %v552 = vshrl.u32 %v551, 7
        %v553 = vadd.s32 %v552, 104
        %554 = vset.pattern.permute.xlu0 %v553
        %555 = vperm.xlu0 %554, %v472
        %v556 = vpop.permute.xlu0 %555
        %v557 = vlaneseq
        %v558 = vshrl.u32 %v557, 7
        %v559 = vadd.s32 %v558, 112
        %560 = vset.pattern.permute.xlu0 %v559
        %561 = vperm.xlu0 %560, %v472
        %v562 = vpop.permute.xlu0 %561
        %v563 = vlaneseq
        %v564 = vshrl.u32 %v563, 7
        %v565 = vadd.s32 %v564, 120
        %566 = vset.pattern.permute.xlu0 %v565
        %567 = vperm.xlu0 %566, %v472
        %v568 = vpop.permute.xlu0 %567
        %vm569 = vcmask 7168
        %v570 = vsel %vm569, %v187, %v381
        %v571 = vsel %vm569, %v193, %v387
        %v572 = vsel %vm569, %v199, %v393
        %v573 = vsel %vm569, %v205, %v399
        %v574 = vsel %vm569, %v211, %v405
        %v575 = vsel %vm569, %v217, %v411
        %v576 = vsel %vm569, %v223, %v417
        %v577 = vsel %vm569, %v229, %v423
        %v578 = vsel %vm569, %v235, %v429
        %v579 = vsel %vm569, %v241, %v435
        %v580 = vsel %vm569, %v247, %v441
        %v581 = vsel %vm569, %v253, %v447
        %v582 = vsel %vm569, %v259, %v453
        %v583 = vsel %vm569, %v265, %v459
        %v584 = vsel %vm569, %v271, %v465
        %v585 = vsel %vm569, %v277, %v471
        %v586 = vsel %vm569, %v284, %v478
        %v587 = vsel %vm569, %v290, %v484
        %v588 = vsel %vm569, %v296, %v490
        %v589 = vsel %vm569, %v302, %v496
        %v590 = vsel %vm569, %v308, %v502
        %v591 = vsel %vm569, %v314, %v508
        %v592 = vsel %vm569, %v320, %v514
        %v593 = vsel %vm569, %v326, %v520
        %v594 = vsel %vm569, %v332, %v526
        %v595 = vsel %vm569, %v338, %v532
        %v596 = vsel %vm569, %v344, %v538
        %v597 = vsel %vm569, %v350, %v544
        %v598 = vsel %vm569, %v356, %v550
        %v599 = vsel %vm569, %v362, %v556
        %v600 = vsel %vm569, %v368, %v562
        %v601 = vsel %vm569, %v374, %v568
        %v602 = vrot.slane %v570, 4
        %vm603 = vcmask 1047556
        %v604 = vsel %vm603, 0.0, %v602
        %v606 = vunpack.c.l.s4 1983009808
        %v607 = vunpack.c.0.s8 %v606
        %v608 = vperm.slane %v570, %v607
        %v610 = vunpack.c.l.s4 1983009808
        %v611 = vunpack.c.0.s8 %v610
        %v612 = vperm.slane %v604, %v611
        %v613 = vrot.slane %v586, 4
        %v614 = vsel %vm603, 0.0, %v613
        %v616 = vunpack.c.l.s4 1983009808
        %v617 = vunpack.c.0.s8 %v616
        %v618 = vperm.slane %v586, %v617
        %v620 = vunpack.c.l.s4 1983009808
        %v621 = vunpack.c.0.s8 %v620
        %v622 = vperm.slane %v614, %v621
        %v623 = vrot.slane %v618, 4
        %v624 = vsel %vm603, %v623, %v608
        %v625 = vrot.slane %v608, 4
        %v626 = vsel %vm603, %v618, %v625
        %v628 = vunpack.c.l.s4 1934713408
        %v629 = vunpack.c.0.s8 %v628
        %v630 = vperm.slane %v624, %v629
        %v632 = vunpack.c.l.s4 1934713408
        %v633 = vunpack.c.0.s8 %v632
        %v634 = vperm.slane %v626, %v633
        %v635 = vrot.slane %v622, 4
        %v636 = vsel %vm603, %v635, %v612
        %v637 = vrot.slane %v612, 4
        %v638 = vsel %vm603, %v622, %v637
        %v640 = vunpack.c.l.s4 1934713408
        %v641 = vunpack.c.0.s8 %v640
        %v642 = vperm.slane %v636, %v641
        %v644 = vunpack.c.l.s4 1934713408
        %v645 = vunpack.c.0.s8 %v644
        %v646 = vperm.slane %v638, %v645
        %v647 = vrot.slane %v630, 4
        %v648 = vsel %vm603, 0.0, %v647
        %v649 = vrot.slane %v634, 4
        %v650 = vsel %vm603, 0.0, %v649
        %v651 = vrot.slane %v642, 4
        %v652 = vsel %vm603, 0.0, %v651
        %v653 = vrot.slane %v646, 4
        %v654 = vsel %vm603, 0.0, %v653
        %v655 = vrot.slane %v571, 4
        %v656 = vsel %vm603, 0.0, %v655
        %v658 = vunpack.c.l.s4 1983009808
        %v659 = vunpack.c.0.s8 %v658
        %v660 = vperm.slane %v571, %v659
        %v662 = vunpack.c.l.s4 1983009808
        %v663 = vunpack.c.0.s8 %v662
        %v664 = vperm.slane %v656, %v663
        %v665 = vrot.slane %v587, 4
        %v666 = vsel %vm603, 0.0, %v665
        %v668 = vunpack.c.l.s4 1983009808
        %v669 = vunpack.c.0.s8 %v668
        %v670 = vperm.slane %v587, %v669
        %v672 = vunpack.c.l.s4 1983009808
        %v673 = vunpack.c.0.s8 %v672
        %v674 = vperm.slane %v666, %v673
        %v675 = vrot.slane %v670, 4
        %v676 = vsel %vm603, %v675, %v660
        %v677 = vrot.slane %v660, 4
        %v678 = vsel %vm603, %v670, %v677
        %v680 = vunpack.c.l.s4 1934713408
        %v681 = vunpack.c.0.s8 %v680
        %v682 = vperm.slane %v676, %v681
        %v684 = vunpack.c.l.s4 1934713408
        %v685 = vunpack.c.0.s8 %v684
        %v686 = vperm.slane %v678, %v685
        %v687 = vrot.slane %v674, 4
        %v688 = vsel %vm603, %v687, %v664
        %v689 = vrot.slane %v664, 4
        %v690 = vsel %vm603, %v674, %v689
        %v692 = vunpack.c.l.s4 1934713408
        %v693 = vunpack.c.0.s8 %v692
        %v694 = vperm.slane %v688, %v693
        %v696 = vunpack.c.l.s4 1934713408
        %v697 = vunpack.c.0.s8 %v696
        %v698 = vperm.slane %v690, %v697
        %v699 = vrot.slane %v682, 4
        %v700 = vsel %vm603, 0.0, %v699
        %v701 = vrot.slane %v686, 4
        %v702 = vsel %vm603, 0.0, %v701
        %v703 = vrot.slane %v694, 4
        %v704 = vsel %vm603, 0.0, %v703
        %v705 = vrot.slane %v698, 4
        %v706 = vsel %vm603, 0.0, %v705
        %v707 = vrot.slane %v572, 4
        %v708 = vsel %vm603, 0.0, %v707
        %v710 = vunpack.c.l.s4 1983009808
        %v711 = vunpack.c.0.s8 %v710
        %v712 = vperm.slane %v572, %v711
        %v714 = vunpack.c.l.s4 1983009808
        %v715 = vunpack.c.0.s8 %v714
        %v716 = vperm.slane %v708, %v715
        %v717 = vrot.slane %v588, 4
        %v718 = vsel %vm603, 0.0, %v717
        %v720 = vunpack.c.l.s4 1983009808
        %v721 = vunpack.c.0.s8 %v720
        %v722 = vperm.slane %v588, %v721
        %v724 = vunpack.c.l.s4 1983009808
        %v725 = vunpack.c.0.s8 %v724
        %v726 = vperm.slane %v718, %v725
        %v727 = vrot.slane %v722, 4
        %v728 = vsel %vm603, %v727, %v712
        %v729 = vrot.slane %v712, 4
        %v730 = vsel %vm603, %v722, %v729
        %v732 = vunpack.c.l.s4 1934713408
        %v733 = vunpack.c.0.s8 %v732
        %v734 = vperm.slane %v728, %v733
        %v736 = vunpack.c.l.s4 1934713408
        %v737 = vunpack.c.0.s8 %v736
        %v738 = vperm.slane %v730, %v737
        %v739 = vrot.slane %v726, 4
        %v740 = vsel %vm603, %v739, %v716
        %v741 = vrot.slane %v716, 4
        %v742 = vsel %vm603, %v726, %v741
        %v744 = vunpack.c.l.s4 1934713408
        %v745 = vunpack.c.0.s8 %v744
        %v746 = vperm.slane %v740, %v745
        %v748 = vunpack.c.l.s4 1934713408
        %v749 = vunpack.c.0.s8 %v748
        %v750 = vperm.slane %v742, %v749
        %v751 = vrot.slane %v734, 4
        %v752 = vsel %vm603, 0.0, %v751
        %v753 = vrot.slane %v738, 4
        %v754 = vsel %vm603, 0.0, %v753
        %v755 = vrot.slane %v746, 4
        %v756 = vsel %vm603, 0.0, %v755
        %v757 = vrot.slane %v750, 4
        %v758 = vsel %vm603, 0.0, %v757
        %v759 = vrot.slane %v573, 4
        %v760 = vsel %vm603, 0.0, %v759
        %v762 = vunpack.c.l.s4 1983009808
        %v763 = vunpack.c.0.s8 %v762
        %v764 = vperm.slane %v573, %v763
        %v766 = vunpack.c.l.s4 1983009808
        %v767 = vunpack.c.0.s8 %v766
        %v768 = vperm.slane %v760, %v767
        %v769 = vrot.slane %v589, 4
        %v770 = vsel %vm603, 0.0, %v769
        %v772 = vunpack.c.l.s4 1983009808
        %v773 = vunpack.c.0.s8 %v772
        %v774 = vperm.slane %v589, %v773
        %v776 = vunpack.c.l.s4 1983009808
        %v777 = vunpack.c.0.s8 %v776
        %v778 = vperm.slane %v770, %v777
        %v779 = vrot.slane %v774, 4
        %v780 = vsel %vm603, %v779, %v764
        %v781 = vrot.slane %v764, 4
        %v782 = vsel %vm603, %v774, %v781
        %v784 = vunpack.c.l.s4 1934713408
        %v785 = vunpack.c.0.s8 %v784
        %v786 = vperm.slane %v780, %v785
        %v788 = vunpack.c.l.s4 1934713408
        %v789 = vunpack.c.0.s8 %v788
        %v790 = vperm.slane %v782, %v789
        %v791 = vrot.slane %v778, 4
        %v792 = vsel %vm603, %v791, %v768
        %v793 = vrot.slane %v768, 4
        %v794 = vsel %vm603, %v778, %v793
        %v796 = vunpack.c.l.s4 1934713408
        %v797 = vunpack.c.0.s8 %v796
        %v798 = vperm.slane %v792, %v797
        %v800 = vunpack.c.l.s4 1934713408
        %v801 = vunpack.c.0.s8 %v800
        %v802 = vperm.slane %v794, %v801
        %v803 = vrot.slane %v786, 4
        %v804 = vsel %vm603, 0.0, %v803
        %v805 = vrot.slane %v790, 4
        %v806 = vsel %vm603, 0.0, %v805
        %v807 = vrot.slane %v798, 4
        %v808 = vsel %vm603, 0.0, %v807
        %v809 = vrot.slane %v802, 4
        %v810 = vsel %vm603, 0.0, %v809
        %v811 = vrot.slane %v574, 4
        %v812 = vsel %vm603, 0.0, %v811
        %v814 = vunpack.c.l.s4 1983009808
        %v815 = vunpack.c.0.s8 %v814
        %v816 = vperm.slane %v574, %v815
        %v818 = vunpack.c.l.s4 1983009808
        %v819 = vunpack.c.0.s8 %v818
        %v820 = vperm.slane %v812, %v819
        %v821 = vrot.slane %v590, 4
        %v822 = vsel %vm603, 0.0, %v821
        %v824 = vunpack.c.l.s4 1983009808
        %v825 = vunpack.c.0.s8 %v824
        %v826 = vperm.slane %v590, %v825
        %v828 = vunpack.c.l.s4 1983009808
        %v829 = vunpack.c.0.s8 %v828
        %v830 = vperm.slane %v822, %v829
        %v831 = vrot.slane %v826, 4
        %v832 = vsel %vm603, %v831, %v816
        %v833 = vrot.slane %v816, 4
        %v834 = vsel %vm603, %v826, %v833
        %v836 = vunpack.c.l.s4 1934713408
        %v837 = vunpack.c.0.s8 %v836
        %v838 = vperm.slane %v832, %v837
        %v840 = vunpack.c.l.s4 1934713408
        %v841 = vunpack.c.0.s8 %v840
        %v842 = vperm.slane %v834, %v841
        %v843 = vrot.slane %v830, 4
        %v844 = vsel %vm603, %v843, %v820
        %v845 = vrot.slane %v820, 4
        %v846 = vsel %vm603, %v830, %v845
        %v848 = vunpack.c.l.s4 1934713408
        %v849 = vunpack.c.0.s8 %v848
        %v850 = vperm.slane %v844, %v849
        %v852 = vunpack.c.l.s4 1934713408
        %v853 = vunpack.c.0.s8 %v852
        %v854 = vperm.slane %v846, %v853
        %v855 = vrot.slane %v838, 4
        %v856 = vsel %vm603, 0.0, %v855
        %v857 = vrot.slane %v842, 4
        %v858 = vsel %vm603, 0.0, %v857
        %v859 = vrot.slane %v850, 4
        %v860 = vsel %vm603, 0.0, %v859
        %v861 = vrot.slane %v854, 4
        %v862 = vsel %vm603, 0.0, %v861
        %v863 = vrot.slane %v575, 4
        %v864 = vsel %vm603, 0.0, %v863
        %v866 = vunpack.c.l.s4 1983009808
        %v867 = vunpack.c.0.s8 %v866
        %v868 = vperm.slane %v575, %v867
        %v870 = vunpack.c.l.s4 1983009808
        %v871 = vunpack.c.0.s8 %v870
        %v872 = vperm.slane %v864, %v871
        %v873 = vrot.slane %v591, 4
        %v874 = vsel %vm603, 0.0, %v873
        %v876 = vunpack.c.l.s4 1983009808
        %v877 = vunpack.c.0.s8 %v876
        %v878 = vperm.slane %v591, %v877
        %v880 = vunpack.c.l.s4 1983009808
        %v881 = vunpack.c.0.s8 %v880
        %v882 = vperm.slane %v874, %v881
        %v883 = vrot.slane %v878, 4
        %v884 = vsel %vm603, %v883, %v868
        %v885 = vrot.slane %v868, 4
        %v886 = vsel %vm603, %v878, %v885
        %v888 = vunpack.c.l.s4 1934713408
        %v889 = vunpack.c.0.s8 %v888
        %v890 = vperm.slane %v884, %v889
        %v892 = vunpack.c.l.s4 1934713408
        %v893 = vunpack.c.0.s8 %v892
        %v894 = vperm.slane %v886, %v893
        %v895 = vrot.slane %v882, 4
        %v896 = vsel %vm603, %v895, %v872
        %v897 = vrot.slane %v872, 4
        %v898 = vsel %vm603, %v882, %v897
        %v900 = vunpack.c.l.s4 1934713408
        %v901 = vunpack.c.0.s8 %v900
        %v902 = vperm.slane %v896, %v901
        %v904 = vunpack.c.l.s4 1934713408
        %v905 = vunpack.c.0.s8 %v904
        %v906 = vperm.slane %v898, %v905
        %v907 = vrot.slane %v890, 4
        %v908 = vsel %vm603, 0.0, %v907
        %v909 = vrot.slane %v894, 4
        %v910 = vsel %vm603, 0.0, %v909
        %v911 = vrot.slane %v902, 4
        %v912 = vsel %vm603, 0.0, %v911
        %v913 = vrot.slane %v906, 4
        %v914 = vsel %vm603, 0.0, %v913
        %v915 = vrot.slane %v576, 4
        %v916 = vsel %vm603, 0.0, %v915
        %v918 = vunpack.c.l.s4 1983009808
        %v919 = vunpack.c.0.s8 %v918
        %v920 = vperm.slane %v576, %v919
        %v922 = vunpack.c.l.s4 1983009808
        %v923 = vunpack.c.0.s8 %v922
        %v924 = vperm.slane %v916, %v923
        %v925 = vrot.slane %v592, 4
        %v926 = vsel %vm603, 0.0, %v925
        %v928 = vunpack.c.l.s4 1983009808
        %v929 = vunpack.c.0.s8 %v928
        %v930 = vperm.slane %v592, %v929
        %v932 = vunpack.c.l.s4 1983009808
        %v933 = vunpack.c.0.s8 %v932
        %v934 = vperm.slane %v926, %v933
        %v935 = vrot.slane %v930, 4
        %v936 = vsel %vm603, %v935, %v920
        %v937 = vrot.slane %v920, 4
        %v938 = vsel %vm603, %v930, %v937
        %v940 = vunpack.c.l.s4 1934713408
        %v941 = vunpack.c.0.s8 %v940
        %v942 = vperm.slane %v936, %v941
        %v944 = vunpack.c.l.s4 1934713408
        %v945 = vunpack.c.0.s8 %v944
        %v946 = vperm.slane %v938, %v945
        %v947 = vrot.slane %v934, 4
        %v948 = vsel %vm603, %v947, %v924
        %v949 = vrot.slane %v924, 4
        %v950 = vsel %vm603, %v934, %v949
        %v952 = vunpack.c.l.s4 1934713408
        %v953 = vunpack.c.0.s8 %v952
        %v954 = vperm.slane %v948, %v953
        %v956 = vunpack.c.l.s4 1934713408
        %v957 = vunpack.c.0.s8 %v956
        %v958 = vperm.slane %v950, %v957
        %v959 = vrot.slane %v942, 4
        %v960 = vsel %vm603, 0.0, %v959
        %v961 = vrot.slane %v946, 4
        %v962 = vsel %vm603, 0.0, %v961
        %v963 = vrot.slane %v954, 4
        %v964 = vsel %vm603, 0.0, %v963
        %v965 = vrot.slane %v958, 4
        %v966 = vsel %vm603, 0.0, %v965
        %v967 = vrot.slane %v577, 4
        %v968 = vsel %vm603, 0.0, %v967
        %v970 = vunpack.c.l.s4 1983009808
        %v971 = vunpack.c.0.s8 %v970
        %v972 = vperm.slane %v577, %v971
        %v974 = vunpack.c.l.s4 1983009808
        %v975 = vunpack.c.0.s8 %v974
        %v976 = vperm.slane %v968, %v975
        %v977 = vrot.slane %v593, 4
        %v978 = vsel %vm603, 0.0, %v977
        %v980 = vunpack.c.l.s4 1983009808
        %v981 = vunpack.c.0.s8 %v980
        %v982 = vperm.slane %v593, %v981
        %v984 = vunpack.c.l.s4 1983009808
        %v985 = vunpack.c.0.s8 %v984
        %v986 = vperm.slane %v978, %v985
        %v987 = vrot.slane %v982, 4
        %v988 = vsel %vm603, %v987, %v972
        %v989 = vrot.slane %v972, 4
        %v990 = vsel %vm603, %v982, %v989
        %v992 = vunpack.c.l.s4 1934713408
        %v993 = vunpack.c.0.s8 %v992
        %v994 = vperm.slane %v988, %v993
        %v996 = vunpack.c.l.s4 1934713408
        %v997 = vunpack.c.0.s8 %v996
        %v998 = vperm.slane %v990, %v997
        %v999 = vrot.slane %v986, 4
        %v1000 = vsel %vm603, %v999, %v976
        %v1001 = vrot.slane %v976, 4
        %v1002 = vsel %vm603, %v986, %v1001
        %v1004 = vunpack.c.l.s4 1934713408
        %v1005 = vunpack.c.0.s8 %v1004
        %v1006 = vperm.slane %v1000, %v1005
        %v1008 = vunpack.c.l.s4 1934713408
        %v1009 = vunpack.c.0.s8 %v1008
        %v1010 = vperm.slane %v1002, %v1009
        %v1011 = vrot.slane %v994, 4
        %v1012 = vsel %vm603, 0.0, %v1011
        %v1013 = vrot.slane %v998, 4
        %v1014 = vsel %vm603, 0.0, %v1013
        %v1015 = vrot.slane %v1006, 4
        %v1016 = vsel %vm603, 0.0, %v1015
        %v1017 = vrot.slane %v1010, 4
        %v1018 = vsel %vm603, 0.0, %v1017
        %v1019 = vrot.slane %v578, 4
        %v1020 = vsel %vm603, 0.0, %v1019
        %v1022 = vunpack.c.l.s4 1983009808
        %v1023 = vunpack.c.0.s8 %v1022
        %v1024 = vperm.slane %v578, %v1023
        %v1026 = vunpack.c.l.s4 1983009808
        %v1027 = vunpack.c.0.s8 %v1026
        %v1028 = vperm.slane %v1020, %v1027
        %v1029 = vrot.slane %v594, 4
        %v1030 = vsel %vm603, 0.0, %v1029
        %v1032 = vunpack.c.l.s4 1983009808
        %v1033 = vunpack.c.0.s8 %v1032
        %v1034 = vperm.slane %v594, %v1033
        %v1036 = vunpack.c.l.s4 1983009808
        %v1037 = vunpack.c.0.s8 %v1036
        %v1038 = vperm.slane %v1030, %v1037
        %v1039 = vrot.slane %v1034, 4
        %v1040 = vsel %vm603, %v1039, %v1024
        %v1041 = vrot.slane %v1024, 4
        %v1042 = vsel %vm603, %v1034, %v1041
        %v1044 = vunpack.c.l.s4 1934713408
        %v1045 = vunpack.c.0.s8 %v1044
        %v1046 = vperm.slane %v1040, %v1045
        %v1048 = vunpack.c.l.s4 1934713408
        %v1049 = vunpack.c.0.s8 %v1048
        %v1050 = vperm.slane %v1042, %v1049
        %v1051 = vrot.slane %v1038, 4
        %v1052 = vsel %vm603, %v1051, %v1028
        %v1053 = vrot.slane %v1028, 4
        %v1054 = vsel %vm603, %v1038, %v1053
        %v1056 = vunpack.c.l.s4 1934713408
        %v1057 = vunpack.c.0.s8 %v1056
        %v1058 = vperm.slane %v1052, %v1057
        %v1060 = vunpack.c.l.s4 1934713408
        %v1061 = vunpack.c.0.s8 %v1060
        %v1062 = vperm.slane %v1054, %v1061
        %v1063 = vrot.slane %v1046, 4
        %v1064 = vsel %vm603, 0.0, %v1063
        %v1065 = vrot.slane %v1050, 4
        %v1066 = vsel %vm603, 0.0, %v1065
        %v1067 = vrot.slane %v1058, 4
        %v1068 = vsel %vm603, 0.0, %v1067
        %v1069 = vrot.slane %v1062, 4
        %v1070 = vsel %vm603, 0.0, %v1069
        %v1071 = vrot.slane %v579, 4
        %v1072 = vsel %vm603, 0.0, %v1071
        %v1074 = vunpack.c.l.s4 1983009808
        %v1075 = vunpack.c.0.s8 %v1074
        %v1076 = vperm.slane %v579, %v1075
        %v1078 = vunpack.c.l.s4 1983009808
        %v1079 = vunpack.c.0.s8 %v1078
        %v1080 = vperm.slane %v1072, %v1079
        %v1081 = vrot.slane %v595, 4
        %v1082 = vsel %vm603, 0.0, %v1081
        %v1084 = vunpack.c.l.s4 1983009808
        %v1085 = vunpack.c.0.s8 %v1084
        %v1086 = vperm.slane %v595, %v1085
        %v1088 = vunpack.c.l.s4 1983009808
        %v1089 = vunpack.c.0.s8 %v1088
        %v1090 = vperm.slane %v1082, %v1089
        %v1091 = vrot.slane %v1086, 4
        %v1092 = vsel %vm603, %v1091, %v1076
        %v1093 = vrot.slane %v1076, 4
        %v1094 = vsel %vm603, %v1086, %v1093
        %v1096 = vunpack.c.l.s4 1934713408
        %v1097 = vunpack.c.0.s8 %v1096
        %v1098 = vperm.slane %v1092, %v1097
        %v1100 = vunpack.c.l.s4 1934713408
        %v1101 = vunpack.c.0.s8 %v1100
        %v1102 = vperm.slane %v1094, %v1101
        %v1103 = vrot.slane %v1090, 4
        %v1104 = vsel %vm603, %v1103, %v1080
        %v1105 = vrot.slane %v1080, 4
        %v1106 = vsel %vm603, %v1090, %v1105
        %v1108 = vunpack.c.l.s4 1934713408
        %v1109 = vunpack.c.0.s8 %v1108
        %v1110 = vperm.slane %v1104, %v1109
        %v1112 = vunpack.c.l.s4 1934713408
        %v1113 = vunpack.c.0.s8 %v1112
        %v1114 = vperm.slane %v1106, %v1113
        %v1115 = vrot.slane %v1098, 4
        %v1116 = vsel %vm603, 0.0, %v1115
        %v1117 = vrot.slane %v1102, 4
        %v1118 = vsel %vm603, 0.0, %v1117
        %v1119 = vrot.slane %v1110, 4
        %v1120 = vsel %vm603, 0.0, %v1119
        %v1121 = vrot.slane %v1114, 4
        %v1122 = vsel %vm603, 0.0, %v1121
        %v1123 = vrot.slane %v580, 4
        %v1124 = vsel %vm603, 0.0, %v1123
        %v1126 = vunpack.c.l.s4 1983009808
        %v1127 = vunpack.c.0.s8 %v1126
        %v1128 = vperm.slane %v580, %v1127
        %v1130 = vunpack.c.l.s4 1983009808
        %v1131 = vunpack.c.0.s8 %v1130
        %v1132 = vperm.slane %v1124, %v1131
        %v1133 = vrot.slane %v596, 4
        %v1134 = vsel %vm603, 0.0, %v1133
        %v1136 = vunpack.c.l.s4 1983009808
        %v1137 = vunpack.c.0.s8 %v1136
        %v1138 = vperm.slane %v596, %v1137
        %v1140 = vunpack.c.l.s4 1983009808
        %v1141 = vunpack.c.0.s8 %v1140
        %v1142 = vperm.slane %v1134, %v1141
        %v1143 = vrot.slane %v1138, 4
        %v1144 = vsel %vm603, %v1143, %v1128
        %v1145 = vrot.slane %v1128, 4
        %v1146 = vsel %vm603, %v1138, %v1145
        %v1148 = vunpack.c.l.s4 1934713408
        %v1149 = vunpack.c.0.s8 %v1148
        %v1150 = vperm.slane %v1144, %v1149
        %v1152 = vunpack.c.l.s4 1934713408
        %v1153 = vunpack.c.0.s8 %v1152
        %v1154 = vperm.slane %v1146, %v1153
        %v1155 = vrot.slane %v1142, 4
        %v1156 = vsel %vm603, %v1155, %v1132
        %v1157 = vrot.slane %v1132, 4
        %v1158 = vsel %vm603, %v1142, %v1157
        %v1160 = vunpack.c.l.s4 1934713408
        %v1161 = vunpack.c.0.s8 %v1160
        %v1162 = vperm.slane %v1156, %v1161
        %v1164 = vunpack.c.l.s4 1934713408
        %v1165 = vunpack.c.0.s8 %v1164
        %v1166 = vperm.slane %v1158, %v1165
        %v1167 = vrot.slane %v1150, 4
        %v1168 = vsel %vm603, 0.0, %v1167
        %v1169 = vrot.slane %v1154, 4
        %v1170 = vsel %vm603, 0.0, %v1169
        %v1171 = vrot.slane %v1162, 4
        %v1172 = vsel %vm603, 0.0, %v1171
        %v1173 = vrot.slane %v1166, 4
        %v1174 = vsel %vm603, 0.0, %v1173
        %v1175 = vrot.slane %v581, 4
        %v1176 = vsel %vm603, 0.0, %v1175
        %v1178 = vunpack.c.l.s4 1983009808
        %v1179 = vunpack.c.0.s8 %v1178
        %v1180 = vperm.slane %v581, %v1179
        %v1182 = vunpack.c.l.s4 1983009808
        %v1183 = vunpack.c.0.s8 %v1182
        %v1184 = vperm.slane %v1176, %v1183
        %v1185 = vrot.slane %v597, 4
        %v1186 = vsel %vm603, 0.0, %v1185
        %v1188 = vunpack.c.l.s4 1983009808
        %v1189 = vunpack.c.0.s8 %v1188
        %v1190 = vperm.slane %v597, %v1189
        %v1192 = vunpack.c.l.s4 1983009808
        %v1193 = vunpack.c.0.s8 %v1192
        %v1194 = vperm.slane %v1186, %v1193
        %v1195 = vrot.slane %v1190, 4
        %v1196 = vsel %vm603, %v1195, %v1180
        %v1197 = vrot.slane %v1180, 4
        %v1198 = vsel %vm603, %v1190, %v1197
        %v1200 = vunpack.c.l.s4 1934713408
        %v1201 = vunpack.c.0.s8 %v1200
        %v1202 = vperm.slane %v1196, %v1201
        %v1204 = vunpack.c.l.s4 1934713408
        %v1205 = vunpack.c.0.s8 %v1204
        %v1206 = vperm.slane %v1198, %v1205
        %v1207 = vrot.slane %v1194, 4
        %v1208 = vsel %vm603, %v1207, %v1184
        %v1209 = vrot.slane %v1184, 4
        %v1210 = vsel %vm603, %v1194, %v1209
        %v1212 = vunpack.c.l.s4 1934713408
        %v1213 = vunpack.c.0.s8 %v1212
        %v1214 = vperm.slane %v1208, %v1213
        %v1216 = vunpack.c.l.s4 1934713408
        %v1217 = vunpack.c.0.s8 %v1216
        %v1218 = vperm.slane %v1210, %v1217
        %v1219 = vrot.slane %v1202, 4
        %v1220 = vsel %vm603, 0.0, %v1219
        %v1221 = vrot.slane %v1206, 4
        %v1222 = vsel %vm603, 0.0, %v1221
        %v1223 = vrot.slane %v1214, 4
        %v1224 = vsel %vm603, 0.0, %v1223
        %v1225 = vrot.slane %v1218, 4
        %v1226 = vsel %vm603, 0.0, %v1225
        %v1227 = vrot.slane %v582, 4
        %v1228 = vsel %vm603, 0.0, %v1227
        %v1230 = vunpack.c.l.s4 1983009808
        %v1231 = vunpack.c.0.s8 %v1230
        %v1232 = vperm.slane %v582, %v1231
        %v1234 = vunpack.c.l.s4 1983009808
        %v1235 = vunpack.c.0.s8 %v1234
        %v1236 = vperm.slane %v1228, %v1235
        %v1237 = vrot.slane %v598, 4
        %v1238 = vsel %vm603, 0.0, %v1237
        %v1240 = vunpack.c.l.s4 1983009808
        %v1241 = vunpack.c.0.s8 %v1240
        %v1242 = vperm.slane %v598, %v1241
        %v1244 = vunpack.c.l.s4 1983009808
        %v1245 = vunpack.c.0.s8 %v1244
        %v1246 = vperm.slane %v1238, %v1245
        %v1247 = vrot.slane %v1242, 4
        %v1248 = vsel %vm603, %v1247, %v1232
        %v1249 = vrot.slane %v1232, 4
        %v1250 = vsel %vm603, %v1242, %v1249
        %v1252 = vunpack.c.l.s4 1934713408
        %v1253 = vunpack.c.0.s8 %v1252
        %v1254 = vperm.slane %v1248, %v1253
        %v1256 = vunpack.c.l.s4 1934713408
        %v1257 = vunpack.c.0.s8 %v1256
        %v1258 = vperm.slane %v1250, %v1257
        %v1259 = vrot.slane %v1246, 4
        %v1260 = vsel %vm603, %v1259, %v1236
        %v1261 = vrot.slane %v1236, 4
        %v1262 = vsel %vm603, %v1246, %v1261
        %v1264 = vunpack.c.l.s4 1934713408
        %v1265 = vunpack.c.0.s8 %v1264
        %v1266 = vperm.slane %v1260, %v1265
        %v1268 = vunpack.c.l.s4 1934713408
        %v1269 = vunpack.c.0.s8 %v1268
        %v1270 = vperm.slane %v1262, %v1269
        %v1271 = vrot.slane %v1254, 4
        %v1272 = vsel %vm603, 0.0, %v1271
        %v1273 = vrot.slane %v1258, 4
        %v1274 = vsel %vm603, 0.0, %v1273
        %v1275 = vrot.slane %v1266, 4
        %v1276 = vsel %vm603, 0.0, %v1275
        %v1277 = vrot.slane %v1270, 4
        %v1278 = vsel %vm603, 0.0, %v1277
        %v1279 = vrot.slane %v583, 4
        %v1280 = vsel %vm603, 0.0, %v1279
        %v1282 = vunpack.c.l.s4 1983009808
        %v1283 = vunpack.c.0.s8 %v1282
        %v1284 = vperm.slane %v583, %v1283
        %v1286 = vunpack.c.l.s4 1983009808
        %v1287 = vunpack.c.0.s8 %v1286
        %v1288 = vperm.slane %v1280, %v1287
        %v1289 = vrot.slane %v599, 4
        %v1290 = vsel %vm603, 0.0, %v1289
        %v1292 = vunpack.c.l.s4 1983009808
        %v1293 = vunpack.c.0.s8 %v1292
        %v1294 = vperm.slane %v599, %v1293
        %v1296 = vunpack.c.l.s4 1983009808
        %v1297 = vunpack.c.0.s8 %v1296
        %v1298 = vperm.slane %v1290, %v1297
        %v1299 = vrot.slane %v1294, 4
        %v1300 = vsel %vm603, %v1299, %v1284
        %v1301 = vrot.slane %v1284, 4
        %v1302 = vsel %vm603, %v1294, %v1301
        %v1304 = vunpack.c.l.s4 1934713408
        %v1305 = vunpack.c.0.s8 %v1304
        %v1306 = vperm.slane %v1300, %v1305
        %v1308 = vunpack.c.l.s4 1934713408
        %v1309 = vunpack.c.0.s8 %v1308
        %v1310 = vperm.slane %v1302, %v1309
        %v1311 = vrot.slane %v1298, 4
        %v1312 = vsel %vm603, %v1311, %v1288
        %v1313 = vrot.slane %v1288, 4
        %v1314 = vsel %vm603, %v1298, %v1313
        %v1316 = vunpack.c.l.s4 1934713408
        %v1317 = vunpack.c.0.s8 %v1316
        %v1318 = vperm.slane %v1312, %v1317
        %v1320 = vunpack.c.l.s4 1934713408
        %v1321 = vunpack.c.0.s8 %v1320
        %v1322 = vperm.slane %v1314, %v1321
        %v1323 = vrot.slane %v1306, 4
        %v1324 = vsel %vm603, 0.0, %v1323
        %v1325 = vrot.slane %v1310, 4
        %v1326 = vsel %vm603, 0.0, %v1325
        %v1327 = vrot.slane %v1318, 4
        %v1328 = vsel %vm603, 0.0, %v1327
        %v1329 = vrot.slane %v1322, 4
        %v1330 = vsel %vm603, 0.0, %v1329
        %v1331 = vrot.slane %v584, 4
        %v1332 = vsel %vm603, 0.0, %v1331
        %v1334 = vunpack.c.l.s4 1983009808
        %v1335 = vunpack.c.0.s8 %v1334
        %v1336 = vperm.slane %v584, %v1335
        %v1338 = vunpack.c.l.s4 1983009808
        %v1339 = vunpack.c.0.s8 %v1338
        %v1340 = vperm.slane %v1332, %v1339
        %v1341 = vrot.slane %v600, 4
        %v1342 = vsel %vm603, 0.0, %v1341
        %v1344 = vunpack.c.l.s4 1983009808
        %v1345 = vunpack.c.0.s8 %v1344
        %v1346 = vperm.slane %v600, %v1345
        %v1348 = vunpack.c.l.s4 1983009808
        %v1349 = vunpack.c.0.s8 %v1348
        %v1350 = vperm.slane %v1342, %v1349
        %v1351 = vrot.slane %v1346, 4
        %v1352 = vsel %vm603, %v1351, %v1336
        %v1353 = vrot.slane %v1336, 4
        %v1354 = vsel %vm603, %v1346, %v1353
        %v1356 = vunpack.c.l.s4 1934713408
        %v1357 = vunpack.c.0.s8 %v1356
        %v1358 = vperm.slane %v1352, %v1357
        %v1360 = vunpack.c.l.s4 1934713408
        %v1361 = vunpack.c.0.s8 %v1360
        %v1362 = vperm.slane %v1354, %v1361
        %v1363 = vrot.slane %v1350, 4
        %v1364 = vsel %vm603, %v1363, %v1340
        %v1365 = vrot.slane %v1340, 4
        %v1366 = vsel %vm603, %v1350, %v1365
        %v1368 = vunpack.c.l.s4 1934713408
        %v1369 = vunpack.c.0.s8 %v1368
        %v1370 = vperm.slane %v1364, %v1369
        %v1372 = vunpack.c.l.s4 1934713408
        %v1373 = vunpack.c.0.s8 %v1372
        %v1374 = vperm.slane %v1366, %v1373
        %v1375 = vrot.slane %v1358, 4
        %v1376 = vsel %vm603, 0.0, %v1375
        %v1377 = vrot.slane %v1362, 4
        %v1378 = vsel %vm603, 0.0, %v1377
        %v1379 = vrot.slane %v1370, 4
        %v1380 = vsel %vm603, 0.0, %v1379
        %v1381 = vrot.slane %v1374, 4
        %v1382 = vsel %vm603, 0.0, %v1381
        %v1383 = vrot.slane %v585, 4
        %v1384 = vsel %vm603, 0.0, %v1383
        %v1386 = vunpack.c.l.s4 1983009808
        %v1387 = vunpack.c.0.s8 %v1386
        %v1388 = vperm.slane %v585, %v1387
        %v1390 = vunpack.c.l.s4 1983009808
        %v1391 = vunpack.c.0.s8 %v1390
        %v1392 = vperm.slane %v1384, %v1391
        %v1393 = vrot.slane %v601, 4
        %v1394 = vsel %vm603, 0.0, %v1393
        %v1396 = vunpack.c.l.s4 1983009808
        %v1397 = vunpack.c.0.s8 %v1396
        %v1398 = vperm.slane %v601, %v1397
        %v1400 = vunpack.c.l.s4 1983009808
        %v1401 = vunpack.c.0.s8 %v1400
        %v1402 = vperm.slane %v1394, %v1401
        %v1403 = vrot.slane %v1398, 4
        %v1404 = vsel %vm603, %v1403, %v1388
        %v1405 = vrot.slane %v1388, 4
        %v1406 = vsel %vm603, %v1398, %v1405
        %v1408 = vunpack.c.l.s4 1934713408
        %v1409 = vunpack.c.0.s8 %v1408
        %v1410 = vperm.slane %v1404, %v1409
        %v1412 = vunpack.c.l.s4 1934713408
        %v1413 = vunpack.c.0.s8 %v1412
        %v1414 = vperm.slane %v1406, %v1413
        %v1415 = vrot.slane %v1402, 4
        %v1416 = vsel %vm603, %v1415, %v1392
        %v1417 = vrot.slane %v1392, 4
        %v1418 = vsel %vm603, %v1402, %v1417
        %v1420 = vunpack.c.l.s4 1934713408
        %v1421 = vunpack.c.0.s8 %v1420
        %v1422 = vperm.slane %v1416, %v1421
        %v1424 = vunpack.c.l.s4 1934713408
        %v1425 = vunpack.c.0.s8 %v1424
        %v1426 = vperm.slane %v1418, %v1425
        %v1427 = vrot.slane %v1410, 4
        %v1428 = vsel %vm603, 0.0, %v1427
        %v1429 = vrot.slane %v1414, 4
        %v1430 = vsel %vm603, 0.0, %v1429
        %v1431 = vrot.slane %v1422, 4
        %v1432 = vsel %vm603, 0.0, %v1431
        %v1433 = vrot.slane %v1426, 4
        %v1434 = vsel %vm603, 0.0, %v1433
        %1436 = vrot.lane.b32.xlu0 %v648, 2
        %v1437 = vpop.permute.xlu0 %1436
        %1440 = vrot.lane.b32.xlu0 %v634, 4
        %v1441 = vpop.permute.xlu0 %1440
        %1444 = vrot.lane.b32.xlu0 %v650, 6
        %v1445 = vpop.permute.xlu0 %1444
        %1448 = vrot.lane.b32.xlu0 %v642, 8
        %v1449 = vpop.permute.xlu0 %1448
        %1452 = vrot.lane.b32.xlu0 %v652, 10
        %v1453 = vpop.permute.xlu0 %1452
        %1456 = vrot.lane.b32.xlu0 %v646, 12
        %v1457 = vpop.permute.xlu0 %1456
        %1460 = vrot.lane.b32.xlu0 %v654, 14
        %v1461 = vpop.permute.xlu0 %1460
        %1464 = vrot.lane.b32.xlu0 %v682, 16
        %v1465 = vpop.permute.xlu0 %1464
        %1468 = vrot.lane.b32.xlu0 %v700, 18
        %v1469 = vpop.permute.xlu0 %1468
        %1472 = vrot.lane.b32.xlu0 %v686, 20
        %v1473 = vpop.permute.xlu0 %1472
        %1476 = vrot.lane.b32.xlu0 %v702, 22
        %v1477 = vpop.permute.xlu0 %1476
        %1480 = vrot.lane.b32.xlu0 %v694, 24
        %v1481 = vpop.permute.xlu0 %1480
        %1484 = vrot.lane.b32.xlu0 %v704, 26
        %v1485 = vpop.permute.xlu0 %1484
        %1488 = vrot.lane.b32.xlu0 %v698, 28
        %v1489 = vpop.permute.xlu0 %1488
        %1492 = vrot.lane.b32.xlu0 %v706, 30
        %v1493 = vpop.permute.xlu0 %1492
        %1496 = vrot.lane.b32.xlu0 %v734, 32
        %v1497 = vpop.permute.xlu0 %1496
        %1500 = vrot.lane.b32.xlu0 %v752, 34
        %v1501 = vpop.permute.xlu0 %1500
        %1504 = vrot.lane.b32.xlu0 %v738, 36
        %v1505 = vpop.permute.xlu0 %1504
        %1508 = vrot.lane.b32.xlu0 %v754, 38
        %v1509 = vpop.permute.xlu0 %1508
        %1512 = vrot.lane.b32.xlu0 %v746, 40
        %v1513 = vpop.permute.xlu0 %1512
        %1516 = vrot.lane.b32.xlu0 %v756, 42
        %v1517 = vpop.permute.xlu0 %1516
        %1520 = vrot.lane.b32.xlu0 %v750, 44
        %v1521 = vpop.permute.xlu0 %1520
        %1524 = vrot.lane.b32.xlu0 %v758, 46
        %v1525 = vpop.permute.xlu0 %1524
        %1528 = vrot.lane.b32.xlu0 %v786, 48
        %v1529 = vpop.permute.xlu0 %1528
        %1532 = vrot.lane.b32.xlu0 %v804, 50
        %v1533 = vpop.permute.xlu0 %1532
        %1536 = vrot.lane.b32.xlu0 %v790, 52
        %v1537 = vpop.permute.xlu0 %1536
        %1540 = vrot.lane.b32.xlu0 %v806, 54
        %v1541 = vpop.permute.xlu0 %1540
        %1544 = vrot.lane.b32.xlu0 %v798, 56
        %v1545 = vpop.permute.xlu0 %1544
        %1548 = vrot.lane.b32.xlu0 %v808, 58
        %v1549 = vpop.permute.xlu0 %1548
        %1552 = vrot.lane.b32.xlu0 %v802, 60
        %v1553 = vpop.permute.xlu0 %1552
        %1556 = vrot.lane.b32.xlu0 %v810, 62
        %v1557 = vpop.permute.xlu0 %1556
        %1560 = vrot.lane.b32.xlu0 %v838, 64
        %v1561 = vpop.permute.xlu0 %1560
        %1564 = vrot.lane.b32.xlu0 %v856, 66
        %v1565 = vpop.permute.xlu0 %1564
        %1568 = vrot.lane.b32.xlu0 %v842, 68
        %v1569 = vpop.permute.xlu0 %1568
        %1572 = vrot.lane.b32.xlu0 %v858, 70
        %v1573 = vpop.permute.xlu0 %1572
        %1576 = vrot.lane.b32.xlu0 %v850, 72
        %v1577 = vpop.permute.xlu0 %1576
        %1580 = vrot.lane.b32.xlu0 %v860, 74
        %v1581 = vpop.permute.xlu0 %1580
        %1584 = vrot.lane.b32.xlu0 %v854, 76
        %v1585 = vpop.permute.xlu0 %1584
        %1588 = vrot.lane.b32.xlu0 %v862, 78
        %v1589 = vpop.permute.xlu0 %1588
        %1592 = vrot.lane.b32.xlu0 %v890, 80
        %v1593 = vpop.permute.xlu0 %1592
        %1596 = vrot.lane.b32.xlu0 %v908, 82
        %v1597 = vpop.permute.xlu0 %1596
        %1600 = vrot.lane.b32.xlu0 %v894, 84
        %v1601 = vpop.permute.xlu0 %1600
        %1604 = vrot.lane.b32.xlu0 %v910, 86
        %v1605 = vpop.permute.xlu0 %1604
        %1608 = vrot.lane.b32.xlu0 %v902, 88
        %v1609 = vpop.permute.xlu0 %1608
        %1612 = vrot.lane.b32.xlu0 %v912, 90
        %v1613 = vpop.permute.xlu0 %1612
        %1616 = vrot.lane.b32.xlu0 %v906, 92
        %v1617 = vpop.permute.xlu0 %1616
        %1620 = vrot.lane.b32.xlu0 %v914, 94
        %v1621 = vpop.permute.xlu0 %1620
        %1624 = vrot.lane.b32.xlu0 %v942, 96
        %v1625 = vpop.permute.xlu0 %1624
        %1628 = vrot.lane.b32.xlu0 %v960, 98
        %v1629 = vpop.permute.xlu0 %1628
        %1632 = vrot.lane.b32.xlu0 %v946, 100
        %v1633 = vpop.permute.xlu0 %1632
        %1636 = vrot.lane.b32.xlu0 %v962, 102
        %v1637 = vpop.permute.xlu0 %1636
        %1640 = vrot.lane.b32.xlu0 %v954, 104
        %v1641 = vpop.permute.xlu0 %1640
        %1644 = vrot.lane.b32.xlu0 %v964, 106
        %v1645 = vpop.permute.xlu0 %1644
        %1648 = vrot.lane.b32.xlu0 %v958, 108
        %v1649 = vpop.permute.xlu0 %1648
        %1652 = vrot.lane.b32.xlu0 %v966, 110
        %v1653 = vpop.permute.xlu0 %1652
        %1656 = vrot.lane.b32.xlu0 %v994, 112
        %v1657 = vpop.permute.xlu0 %1656
        %1660 = vrot.lane.b32.xlu0 %v1012, 114
        %v1661 = vpop.permute.xlu0 %1660
        %1664 = vrot.lane.b32.xlu0 %v998, 116
        %v1665 = vpop.permute.xlu0 %1664
        %1668 = vrot.lane.b32.xlu0 %v1014, 118
        %v1669 = vpop.permute.xlu0 %1668
        %1672 = vrot.lane.b32.xlu0 %v1006, 120
        %v1673 = vpop.permute.xlu0 %1672
        %1676 = vrot.lane.b32.xlu0 %v1016, 122
        %v1677 = vpop.permute.xlu0 %1676
        %1680 = vrot.lane.b32.xlu0 %v1010, 124
        %v1681 = vpop.permute.xlu0 %1680
        %1684 = vrot.lane.b32.xlu0 %v1018, 126
        %v1685 = vpop.permute.xlu0 %1684
        %1688 = vrot.lane.b32.xlu0 %v1064, 2
        %v1689 = vpop.permute.xlu0 %1688
        %1692 = vrot.lane.b32.xlu0 %v1050, 4
        %v1693 = vpop.permute.xlu0 %1692
        %1696 = vrot.lane.b32.xlu0 %v1066, 6
        %v1697 = vpop.permute.xlu0 %1696
        %1700 = vrot.lane.b32.xlu0 %v1058, 8
        %v1701 = vpop.permute.xlu0 %1700
        %1704 = vrot.lane.b32.xlu0 %v1068, 10
        %v1705 = vpop.permute.xlu0 %1704
        %1708 = vrot.lane.b32.xlu0 %v1062, 12
        %v1709 = vpop.permute.xlu0 %1708
        %1712 = vrot.lane.b32.xlu0 %v1070, 14
        %v1713 = vpop.permute.xlu0 %1712
        %1716 = vrot.lane.b32.xlu0 %v1098, 16
        %v1717 = vpop.permute.xlu0 %1716
        %1720 = vrot.lane.b32.xlu0 %v1116, 18
        %v1721 = vpop.permute.xlu0 %1720
        %1724 = vrot.lane.b32.xlu0 %v1102, 20
        %v1725 = vpop.permute.xlu0 %1724
        %1728 = vrot.lane.b32.xlu0 %v1118, 22
        %v1729 = vpop.permute.xlu0 %1728
        %1732 = vrot.lane.b32.xlu0 %v1110, 24
        %v1733 = vpop.permute.xlu0 %1732
        %1736 = vrot.lane.b32.xlu0 %v1120, 26
        %v1737 = vpop.permute.xlu0 %1736
        %1740 = vrot.lane.b32.xlu0 %v1114, 28
        %v1741 = vpop.permute.xlu0 %1740
        %1744 = vrot.lane.b32.xlu0 %v1122, 30
        %v1745 = vpop.permute.xlu0 %1744
        %1748 = vrot.lane.b32.xlu0 %v1150, 32
        %v1749 = vpop.permute.xlu0 %1748
        %1752 = vrot.lane.b32.xlu0 %v1168, 34
        %v1753 = vpop.permute.xlu0 %1752
        %1756 = vrot.lane.b32.xlu0 %v1154, 36
        %v1757 = vpop.permute.xlu0 %1756
        %1760 = vrot.lane.b32.xlu0 %v1170, 38
        %v1761 = vpop.permute.xlu0 %1760
        %1764 = vrot.lane.b32.xlu0 %v1162, 40
        %v1765 = vpop.permute.xlu0 %1764
        %1768 = vrot.lane.b32.xlu0 %v1172, 42
        %v1769 = vpop.permute.xlu0 %1768
        %1772 = vrot.lane.b32.xlu0 %v1166, 44
        %v1773 = vpop.permute.xlu0 %1772
        %1776 = vrot.lane.b32.xlu0 %v1174, 46
        %v1777 = vpop.permute.xlu0 %1776
        %1780 = vrot.lane.b32.xlu0 %v1202, 48
        %v1781 = vpop.permute.xlu0 %1780
        %1784 = vrot.lane.b32.xlu0 %v1220, 50
        %v1785 = vpop.permute.xlu0 %1784
        %1788 = vrot.lane.b32.xlu0 %v1206, 52
        %v1789 = vpop.permute.xlu0 %1788
        %1792 = vrot.lane.b32.xlu0 %v1222, 54
        %v1793 = vpop.permute.xlu0 %1792
        %1796 = vrot.lane.b32.xlu0 %v1214, 56
        %v1797 = vpop.permute.xlu0 %1796
        %1800 = vrot.lane.b32.xlu0 %v1224, 58
        %v1801 = vpop.permute.xlu0 %1800
        %1804 = vrot.lane.b32.xlu0 %v1218, 60
        %v1805 = vpop.permute.xlu0 %1804
        %1808 = vrot.lane.b32.xlu0 %v1226, 62
        %v1809 = vpop.permute.xlu0 %1808
        %1812 = vrot.lane.b32.xlu0 %v1254, 64
        %v1813 = vpop.permute.xlu0 %1812
        %1816 = vrot.lane.b32.xlu0 %v1272, 66
        %v1817 = vpop.permute.xlu0 %1816
        %1820 = vrot.lane.b32.xlu0 %v1258, 68
        %v1821 = vpop.permute.xlu0 %1820
        %1824 = vrot.lane.b32.xlu0 %v1274, 70
        %v1825 = vpop.permute.xlu0 %1824
        %1828 = vrot.lane.b32.xlu0 %v1266, 72
        %v1829 = vpop.permute.xlu0 %1828
        %1832 = vrot.lane.b32.xlu0 %v1276, 74
        %v1833 = vpop.permute.xlu0 %1832
        %1836 = vrot.lane.b32.xlu0 %v1270, 76
        %v1837 = vpop.permute.xlu0 %1836
        %1840 = vrot.lane.b32.xlu0 %v1278, 78
        %v1841 = vpop.permute.xlu0 %1840
        %1844 = vrot.lane.b32.xlu0 %v1306, 80
        %v1845 = vpop.permute.xlu0 %1844
        %1848 = vrot.lane.b32.xlu0 %v1324, 82
        %v1849 = vpop.permute.xlu0 %1848
        %1852 = vrot.lane.b32.xlu0 %v1310, 84
        %v1853 = vpop.permute.xlu0 %1852
        %1856 = vrot.lane.b32.xlu0 %v1326, 86
        %v1857 = vpop.permute.xlu0 %1856
        %1860 = vrot.lane.b32.xlu0 %v1318, 88
        %v1861 = vpop.permute.xlu0 %1860
        %1864 = vrot.lane.b32.xlu0 %v1328, 90
        %v1865 = vpop.permute.xlu0 %1864
        %1868 = vrot.lane.b32.xlu0 %v1322, 92
        %v1869 = vpop.permute.xlu0 %1868
        %1872 = vrot.lane.b32.xlu0 %v1330, 94
        %v1873 = vpop.permute.xlu0 %1872
        %1876 = vrot.lane.b32.xlu0 %v1358, 96
        %v1877 = vpop.permute.xlu0 %1876
        %1880 = vrot.lane.b32.xlu0 %v1376, 98
        %v1881 = vpop.permute.xlu0 %1880
        %1884 = vrot.lane.b32.xlu0 %v1362, 100
        %v1885 = vpop.permute.xlu0 %1884
        %1888 = vrot.lane.b32.xlu0 %v1378, 102
        %v1889 = vpop.permute.xlu0 %1888
        %1892 = vrot.lane.b32.xlu0 %v1370, 104
        %v1893 = vpop.permute.xlu0 %1892
        %1896 = vrot.lane.b32.xlu0 %v1380, 106
        %v1897 = vpop.permute.xlu0 %1896
        %1900 = vrot.lane.b32.xlu0 %v1374, 108
        %v1901 = vpop.permute.xlu0 %1900
        %1904 = vrot.lane.b32.xlu0 %v1382, 110
        %v1905 = vpop.permute.xlu0 %1904
        %1908 = vrot.lane.b32.xlu0 %v1410, 112
        %v1909 = vpop.permute.xlu0 %1908
        %1912 = vrot.lane.b32.xlu0 %v1428, 114
        %v1913 = vpop.permute.xlu0 %1912
        %1916 = vrot.lane.b32.xlu0 %v1414, 116
        %v1917 = vpop.permute.xlu0 %1916
        %1920 = vrot.lane.b32.xlu0 %v1430, 118
        %v1921 = vpop.permute.xlu0 %1920
        %1924 = vrot.lane.b32.xlu0 %v1422, 120
        %v1925 = vpop.permute.xlu0 %1924
        %1928 = vrot.lane.b32.xlu0 %v1432, 122
        %v1929 = vpop.permute.xlu0 %1928
        %1932 = vrot.lane.b32.xlu0 %v1426, 124
        %v1933 = vpop.permute.xlu0 %1932
        %1936 = vrot.lane.b32.xlu0 %v1434, 126
        %v1937 = vpop.permute.xlu0 %1936
        %vm1939 = vcmask 15360
        %v1940 = vsel %vm1939, %v630, %v1437
        %vm1941 = vcmask 31744
        %v1942 = vsel %vm1941, %v1940, %v1441
        %vm1943 = vcmask 48128
        %v1944 = vsel %vm1943, %v1942, %v1445
        %vm1945 = vcmask 64512
        %v1946 = vsel %vm1945, %v1944, %v1449
        %vm1947 = vcmask 80896
        %v1948 = vsel %vm1947, %v1946, %v1453
        %vm1949 = vcmask 97280
        %v1950 = vsel %vm1949, %v1948, %v1457
        %vm1951 = vcmask 113664
        %v1952 = vsel %vm1951, %v1950, %v1461
        %vm1953 = vcmask 130048
        %v1954 = vsel %vm1953, %v1952, %v1465
        %vm1955 = vcmask 146432
        %v1956 = vsel %vm1955, %v1954, %v1469
        %vm1957 = vcmask 162816
        %v1958 = vsel %vm1957, %v1956, %v1473
        %vm1959 = vcmask 179200
        %v1960 = vsel %vm1959, %v1958, %v1477
        %vm1961 = vcmask 195584
        %v1962 = vsel %vm1961, %v1960, %v1481
        %vm1963 = vcmask 211968
        %v1964 = vsel %vm1963, %v1962, %v1485
        %vm1965 = vcmask 228352
        %v1966 = vsel %vm1965, %v1964, %v1489
        %vm1967 = vcmask 244736
        %v1968 = vsel %vm1967, %v1966, %v1493
        %vm1969 = vcmask 261120
        %v1970 = vsel %vm1969, %v1968, %v1497
        %vm1971 = vcmask 277504
        %v1972 = vsel %vm1971, %v1970, %v1501
        %vm1973 = vcmask 293888
        %v1974 = vsel %vm1973, %v1972, %v1505
        %vm1975 = vcmask 310272
        %v1976 = vsel %vm1975, %v1974, %v1509
        %vm1977 = vcmask 326656
        %v1978 = vsel %vm1977, %v1976, %v1513
        %vm1979 = vcmask 343040
        %v1980 = vsel %vm1979, %v1978, %v1517
        %vm1981 = vcmask 359424
        %v1982 = vsel %vm1981, %v1980, %v1521
        %vm1983 = vcmask 375808
        %v1984 = vsel %vm1983, %v1982, %v1525
        %vm1985 = vcmask 392192
        %v1986 = vsel %vm1985, %v1984, %v1529
        %vm1987 = vcmask 408576
        %v1988 = vsel %vm1987, %v1986, %v1533
        %vm1989 = vcmask 424960
        %v1990 = vsel %vm1989, %v1988, %v1537
        %vm1991 = vcmask 441344
        %v1992 = vsel %vm1991, %v1990, %v1541
        %vm1993 = vcmask 457728
        %v1994 = vsel %vm1993, %v1992, %v1545
        %vm1995 = vcmask 474112
        %v1996 = vsel %vm1995, %v1994, %v1549
        %vm1997 = vcmask 490496
        %v1998 = vsel %vm1997, %v1996, %v1553
        %vm1999 = vcmask 506880
        %v2000 = vsel %vm1999, %v1998, %v1557
        %vm2001 = vcmask 523264
        %v2002 = vsel %vm2001, %v2000, %v1561
        %vm2003 = vcmask 539648
        %v2004 = vsel %vm2003, %v2002, %v1565
        %vm2005 = vcmask 556032
        %v2006 = vsel %vm2005, %v2004, %v1569
        %vm2007 = vcmask 572416
        %v2008 = vsel %vm2007, %v2006, %v1573
        %vm2009 = vcmask 588800
        %v2010 = vsel %vm2009, %v2008, %v1577
        %vm2011 = vcmask 605184
        %v2012 = vsel %vm2011, %v2010, %v1581
        %vm2013 = vcmask 621568
        %v2014 = vsel %vm2013, %v2012, %v1585
        %vm2015 = vcmask 637952
        %v2016 = vsel %vm2015, %v2014, %v1589
        %vm2017 = vcmask 654336
        %v2018 = vsel %vm2017, %v2016, %v1593
        %vm2019 = vcmask 670720
        %v2020 = vsel %vm2019, %v2018, %v1597
        %vm2021 = vcmask 687104
        %v2022 = vsel %vm2021, %v2020, %v1601
        %vm2023 = vcmask 703488
        %v2024 = vsel %vm2023, %v2022, %v1605
        %vm2025 = vcmask 719872
        %v2026 = vsel %vm2025, %v2024, %v1609
        %vm2027 = vcmask 736256
        %v2028 = vsel %vm2027, %v2026, %v1613
        %vm2029 = vcmask 752640
        %v2030 = vsel %vm2029, %v2028, %v1617
        %vm2031 = vcmask 769024
        %v2032 = vsel %vm2031, %v2030, %v1621
        %vm2033 = vcmask 785408
        %v2034 = vsel %vm2033, %v2032, %v1625
        %vm2035 = vcmask 801792
        %v2036 = vsel %vm2035, %v2034, %v1629
        %vm2037 = vcmask 818176
        %v2038 = vsel %vm2037, %v2036, %v1633
        %vm2039 = vcmask 834560
        %v2040 = vsel %vm2039, %v2038, %v1637
        %vm2041 = vcmask 850944
        %v2042 = vsel %vm2041, %v2040, %v1641
        %vm2043 = vcmask 867328
        %v2044 = vsel %vm2043, %v2042, %v1645
        %vm2045 = vcmask 883712
        %v2046 = vsel %vm2045, %v2044, %v1649
        %vm2047 = vcmask 900096
        %v2048 = vsel %vm2047, %v2046, %v1653
        %vm2049 = vcmask 916480
        %v2050 = vsel %vm2049, %v2048, %v1657
        %vm2051 = vcmask 932864
        %v2052 = vsel %vm2051, %v2050, %v1661
        %vm2053 = vcmask 949248
        %v2054 = vsel %vm2053, %v2052, %v1665
        %vm2055 = vcmask 965632
        %v2056 = vsel %vm2055, %v2054, %v1669
        %vm2057 = vcmask 982016
        %v2058 = vsel %vm2057, %v2056, %v1673
        %vm2059 = vcmask 998400
        %v2060 = vsel %vm2059, %v2058, %v1677
        %vm2061 = vcmask 1014784
        %v2062 = vsel %vm2061, %v2060, %v1681
        %vm2063 = vcmask 1031168
        %v2064 = vsel %vm2063, %v2062, %v1685
        %v2065 = vsel %vm1939, %v1046, %v1689
        %v2066 = vsel %vm1941, %v2065, %v1693
        %v2067 = vsel %vm1943, %v2066, %v1697
        %v2068 = vsel %vm1945, %v2067, %v1701
        %v2069 = vsel %vm1947, %v2068, %v1705
        %v2070 = vsel %vm1949, %v2069, %v1709
        %v2071 = vsel %vm1951, %v2070, %v1713
        %v2072 = vsel %vm1953, %v2071, %v1717
        %v2073 = vsel %vm1955, %v2072, %v1721
        %v2074 = vsel %vm1957, %v2073, %v1725
        %v2075 = vsel %vm1959, %v2074, %v1729
        %v2076 = vsel %vm1961, %v2075, %v1733
        %v2077 = vsel %vm1963, %v2076, %v1737
        %v2078 = vsel %vm1965, %v2077, %v1741
        %v2079 = vsel %vm1967, %v2078, %v1745
        %v2080 = vsel %vm1969, %v2079, %v1749
        %v2081 = vsel %vm1971, %v2080, %v1753
        %v2082 = vsel %vm1973, %v2081, %v1757
        %v2083 = vsel %vm1975, %v2082, %v1761
        %v2084 = vsel %vm1977, %v2083, %v1765
        %v2085 = vsel %vm1979, %v2084, %v1769
        %v2086 = vsel %vm1981, %v2085, %v1773
        %v2087 = vsel %vm1983, %v2086, %v1777
        %v2088 = vsel %vm1985, %v2087, %v1781
        %v2089 = vsel %vm1987, %v2088, %v1785
        %v2090 = vsel %vm1989, %v2089, %v1789
        %v2091 = vsel %vm1991, %v2090, %v1793
        %v2092 = vsel %vm1993, %v2091, %v1797
        %v2093 = vsel %vm1995, %v2092, %v1801
        %v2094 = vsel %vm1997, %v2093, %v1805
        %v2095 = vsel %vm1999, %v2094, %v1809
        %v2096 = vsel %vm2001, %v2095, %v1813
        %v2097 = vsel %vm2003, %v2096, %v1817
        %v2098 = vsel %vm2005, %v2097, %v1821
        %v2099 = vsel %vm2007, %v2098, %v1825
        %v2100 = vsel %vm2009, %v2099, %v1829
        %v2101 = vsel %vm2011, %v2100, %v1833
        %v2102 = vsel %vm2013, %v2101, %v1837
        %v2103 = vsel %vm2015, %v2102, %v1841
        %v2104 = vsel %vm2017, %v2103, %v1845
        %v2105 = vsel %vm2019, %v2104, %v1849
        %v2106 = vsel %vm2021, %v2105, %v1853
        %v2107 = vsel %vm2023, %v2106, %v1857
        %v2108 = vsel %vm2025, %v2107, %v1861
        %v2109 = vsel %vm2027, %v2108, %v1865
        %v2110 = vsel %vm2029, %v2109, %v1869
        %v2111 = vsel %vm2031, %v2110, %v1873
        %v2112 = vsel %vm2033, %v2111, %v1877
        %v2113 = vsel %vm2035, %v2112, %v1881
        %v2114 = vsel %vm2037, %v2113, %v1885
        %v2115 = vsel %vm2039, %v2114, %v1889
        %v2116 = vsel %vm2041, %v2115, %v1893
        %v2117 = vsel %vm2043, %v2116, %v1897
        %v2118 = vsel %vm2045, %v2117, %v1901
        %v2119 = vsel %vm2047, %v2118, %v1905
        %v2120 = vsel %vm2049, %v2119, %v1909
        %v2121 = vsel %vm2051, %v2120, %v1913
        %v2122 = vsel %vm2053, %v2121, %v1917
        %v2123 = vsel %vm2055, %v2122, %v1921
        %v2124 = vsel %vm2057, %v2123, %v1925
        %v2125 = vsel %vm2059, %v2124, %v1929
        %v2126 = vsel %vm2061, %v2125, %v1933
        %v2127 = vsel %vm2063, %v2126, %v1937
        %v2130 = vrot.slane %v2127, 6
        %vm2131 = vcmask 1041408
        %v2132 = vsel %vm2131, %v2064, %v2130
        %2134 = vst [vmem:[%s153] sm:$0xf] %v2132
        %s2135 = sand.u32 %s68, 1
        %s2136 = scalar_lea.sflag [#allocation4], %s2135
        %s2137 = sand.u32 %s68, 1
        %s2138 = smul.addr %s2137, 4
        %s2139 = scalar_lea.vmem [#allocation5], %s2138
        // Predicated region
        $region29: #{tpu_custom_call.1} parent=23 // pred_check
          %p2140 = pneg %p78
        $region30: #{tpu_custom_call.1} parent=23 // pred_check_branch
          %2142 = sbr.rel (%p2140) target = $region32
        $region31: #{tpu_custom_call.1} parent=23 // pred_region
          %2144 = vsyncadd %s2136, 0
          %s2145 = smul.addr %s23, 2
          %s2146 = smul.addr %s22, 2
          %s2147 = sadd.s32 %s2145, %s2146
          %s2148 = smul.addr %s2147, 2
          %s2149 = scalar_lea.hbm %s1, %s2148
          %s2151 = sshll.u32 %s2139, 4
          %s2152 = int_to_ptr.vmem [resolvable:$true] %s2151
          %s2153 = sshll.u32 %s2149, 4
          %s2154 = int_to_ptr.hbm [resolvable:$true] %s2153
          %2156 = dma.vmem_to_hbm [thread:$0]  %s2152, 64, %s2154, %s2136
        $region32: #{tpu_custom_call.1} parent=23 // pred_fallthru
          _
      $region24: #{tpu_custom_call.1} parent=5 // pred_fallthru
        _
      %p2157 = scmp.le.s32.totalorder 2, %s13
      // Predicated region
      $region33: #{tpu_custom_call.1} parent=5 // pred_check
        %p2158 = pneg %p2157
      $region34: #{tpu_custom_call.1} parent=5 // pred_check_branch
        %2160 = sbr.rel (%p2158) target = $region36
      $region35: #{tpu_custom_call.1} parent=5 // pred_region
        %s2161 = ssub.s32 %s13, 2
        // Predicated region
        $region37: #{tpu_custom_call.1} parent=35 // pred_check
          %p2162 = pneg %p84
        $region38: #{tpu_custom_call.1} parent=35 // pred_check_branch
          %2164 = sbr.rel (%p2162) target = $region40
        $region39: #{tpu_custom_call.1} parent=35 // pred_region
          %s2165 = sand.u32 %s69, 1
          %s2166 = scalar_lea.sflag [#allocation4], %s2165
          %s2167 = sand.u32 %s69, 1
          %s2168 = smul.addr %s2167, 4
          %s2169 = scalar_lea.vmem [#allocation5], %s2168
          %2171 = dma.done %s2166, 64
        $region40: #{tpu_custom_call.1} parent=35 // pred_fallthru
          _
      $region36: #{tpu_custom_call.1} parent=5 // pred_fallthru
        _
    $region6: #{tpu_custom_call.1} parent=1 // loop_footer
      %s17 = sadd.s32 1, %s13
    $region7: #{tpu_custom_call.1} parent=1 // loop_footer_branch
      %12 = sbr.rel target = $region3
    $region8: #{tpu_custom_call.1} parent=1 // loop_exit
      _
    %2172 = vsyncpa [#allocation3], 1
    %s2173 = scalar_lea.sflag [#allocation3], 1
    %2174 = vsyncpa %s2173, 1
    %2175 = vsyncpa [#allocation4], 1
    %s2176 = scalar_lea.sflag [#allocation4], 1
    %2177 = vsyncpa %s2176, 1

</llo_original>
